<compile_context>
chip_gen: v7x
topology: tpu7x:2x2x1
jax: 0.10.0
libtpu: 0.0.40
codegen_flags: <defaults>
</compile_context>

<pallas_src>
import math

import jax
import jax.numpy as jnp
from jax import lax
from jax.experimental import pallas as pl
from jax.experimental.pallas import tpu as pltpu

BN_EPS = 1e-5   # nn.BatchNorm1d default eps
LANE = 128      # TPU lane width: hidden/feature dims are zero-padded to this


def _round_up(x, m):
    return ((x + m - 1) // m) * m


# --------------------------------- fused kernel ---------------------------------
def gin_fused_kernel(eps_ref, a_ref, h_ref, w1_ref, w2_ref, vec_ref, o_ref):
    """All GIN layers in one kernel invocation.

    eps_ref : SMEM (L,)         per-layer learnable eps (init 0)
    a_ref   : VMEM (N, N)       dense adjacency, bf16 (0/1 values -> lossless)
    h_ref   : VMEM (N, HP)      node features, zero-padded to HP lanes, f32
    w1_ref  : VMEM (L, HP, HP)  MLP hidden Linear weights (pre-transposed, padded)
    w2_ref  : VMEM (L, HP, HP)  MLP output Linear weights (padded)
    vec_ref : VMEM (L, 8, HP)   packed per-layer vectors:
                                rows = [b1, g1, be1, b2, g2, be2, g3, be3]
    o_ref   : VMEM (N, HP)      output node features (lane-dense, padded)
    """
    num_layers = w1_ref.shape[0]
    n = a_ref.shape[0]
    inv_n = 1.0 / n

    # Adjacency read once; stays resident for every layer.
    a_bf = a_ref[...]

    # Hoisted once (not per BN call / per layer): ones operand that pushes the
    # BN column sums onto the mostly-idle MXU slot instead of XLU/VPU sublane
    # reductions.  8 rows so the matmul M-dim is sublane-aligned.
    ones8 = jnp.ones((8, n), jnp.float32)

    def bn_relu(z, gamma, beta):
        # Training-mode BatchNorm1d (batch stats over the node axis) + ReLU.
        # Single-pass variance with f32 accumulation, clamped at 0 against
        # cancellation; pad columns (gamma=beta=0) stay exactly 0.
        s = jnp.dot(ones8, z, preferred_element_type=jnp.float32)[0:1]
        ss = jnp.dot(ones8, z * z, preferred_element_type=jnp.float32)[0:1]
        mean = s * inv_n
        var = jnp.maximum(ss * inv_n - mean * mean, 0.0)
        scale = gamma * lax.rsqrt(var + BN_EPS)      # precomputed per column
        shift = beta - scale * mean
        return jnp.maximum(z * scale + shift, 0.0)   # 1 mul + 1 add per element

    h = h_ref[...]                                   # (N, HP) f32
    for layer in range(num_layers):                  # static unroll over layers
        eps = eps_ref[layer]
        w1 = w1_ref[layer]
        w2 = w2_ref[layer]
        vec = vec_ref[layer]                         # (8, HP)
        b1, g1, be1 = vec[0:1], vec[1:2], vec[2:3]
        b2, g2, be2 = vec[3:4], vec[4:5], vec[5:6]
        g3, be3 = vec[6:7], vec[7:8]

        # Neighbor 'sum' aggregation: bf16 x bf16 MXU matmul, f32 accumulate.
        agg = jnp.dot(a_bf, h.astype(jnp.bfloat16),
                      preferred_element_type=jnp.float32)
        # (1+eps)*h stays a cheap VPU op (folding eps into the adjacency
        # diagonal would need a per-layer copy of A, defeating A-residency).
        z = (1.0 + eps) * h + agg

        # MLP hidden layer: Linear -> BN -> ReLU   (elementwise math in f32)
        z = jnp.dot(z, w1, preferred_element_type=jnp.float32) + b1
        z = bn_relu(z, g1, be1)
        # MLP output layer (linear, no activation inside the MLP)
        z = jnp.dot(z, w2, preferred_element_type=jnp.float32) + b2
        # ApplyNodeFunc: BN -> ReLU
        z = bn_relu(z, g2, be2)
        # GIN outer: BN -> ReLU
        z = bn_relu(z, g3, be3)
        h = z

    o_ref[...] = h                                   # lane-dense (HP = 128k) store


# ------------------------------ host-side wrappers ------------------------------
def pack_gin_params(layer_params, input_dim, hidden_dim):
    """Stack & zero-pad per-layer parameters into lane-dense uniform arrays."""
    num_layers = len(layer_params)
    hp = _round_up(max(input_dim, hidden_dim), LANE)
    w1 = jnp.zeros((num_layers, hp, hp), jnp.float32)
    w2 = jnp.zeros((num_layers, hp, hp), jnp.float32)
    vec = jnp.zeros((num_layers, 8, hp), jnp.float32)
    eps = jnp.zeros((num_layers,), jnp.float32)
    for l, p in enumerate(layer_params):
        din = input_dim if l == 0 else hidden_dim
        w1 = w1.at[l, :din, :hidden_dim].set(p["w1"])
        w2 = w2.at[l, :hidden_dim, :hidden_dim].set(p["w2"])
        rows = jnp.concatenate(
            [p["b1"], p["g1"], p["be1"], p["b2"], p["g2"], p["be2"],
             p["g3"], p["be3"]], axis=0)             # (8, hidden_dim)
        vec = vec.at[l, :, :hidden_dim].set(rows)
        eps = eps.at[l].set(p["eps"][0])
    return dict(eps=eps, w1=w1, w2=w2, vec=vec, hp=hp)


def gin_fused_call(a_bf16, h_padded, packed):
    """Single pallas_call running every GIN layer; whole graph in VMEM."""
    n, hp = h_padded.shape
    vmem = pl.BlockSpec(memory_space=pltpu.MemorySpace.VMEM)
    smem = pl.BlockSpec(memory_space=pltpu.MemorySpace.SMEM)
    return pl.pallas_call(
        gin_fused_kernel,
        out_shape=jax.ShapeDtypeStruct((n, hp), jnp.float32),
        in_specs=[smem, vmem, vmem, vmem, vmem, vmem],
        out_specs=vmem,
    )(packed["eps"], a_bf16, h_padded, packed["w1"], packed["w2"], packed["vec"])


def gin_forward(adj, feats, layer_params):
    """Full GIN forward pass (all layers) in one fused Pallas kernel."""
    n, input_dim = feats.shape
    hidden_dim = layer_params[0]["w1"].shape[1]
    packed = pack_gin_params(layer_params, input_dim, hidden_dim)
    hp = packed["hp"]
    a_bf16 = adj.astype(jnp.bfloat16)                       # 0/1 -> lossless, half DMA
    h0 = jnp.zeros((n, hp), jnp.float32).at[:, :input_dim].set(feats)
    out = gin_fused_call(a_bf16, h0, packed)
    return out[:, :hidden_dim]                              # drop lane padding


# -------------------- pure-JAX reference (PyTorch f32 semantics) --------------------
def _bn_relu_ref(x, gamma, beta):
    mean = jnp.mean(x, axis=0, keepdims=True)
    var = jnp.mean((x - mean) ** 2, axis=0, keepdims=True)  # biased variance
    y = gamma * (x - mean) * lax.rsqrt(var + BN_EPS) + beta
    return jnp.maximum(y, 0.0)


def gin_forward_ref(a, h, layer_params):
    for p in layer_params:
        z = (1.0 + p["eps"][0]) * h + a @ h
        z = _bn_relu_ref(z @ p["w1"] + p["b1"], p["g1"], p["be1"])
        z = z @ p["w2"] + p["b2"]
        z = _bn_relu_ref(z, p["g2"], p["be2"])
        z = _bn_relu_ref(z, p["g3"], p["be3"])
        h = z
    return h


# --------------------------- deterministic parameter init ---------------------------
def init_linear(key, din, dout):
    k_w, k_b = jax.random.split(key)
    bound = 1.0 / math.sqrt(din)
    # Stored pre-transposed: (din, dout) so the kernel does x @ W^T directly.
    w = jax.random.uniform(k_w, (din, dout), jnp.float32, -bound, bound)
    b = jax.random.uniform(k_b, (1, dout), jnp.float32, -bound, bound)
    return w, b


def init_bn(key, dim):
    k_g, k_b = jax.random.split(key)
    gamma = 1.0 + 0.05 * jax.random.normal(k_g, (1, dim), jnp.float32)
    beta = 0.05 * jax.random.normal(k_b, (1, dim), jnp.float32)
    return gamma, beta


def init_gin_params(key, num_layers, input_dim, hidden_dim):
    params = []
    for layer in range(num_layers):
        din = input_dim if layer == 0 else hidden_dim
        key, k1, k2, k3, k4, k5 = jax.random.split(key, 6)
        w1, b1 = init_linear(k1, din, hidden_dim)
        w2, b2 = init_linear(k2, hidden_dim, hidden_dim)
        g1, be1 = init_bn(k3, hidden_dim)   # MLP hidden BN
        g2, be2 = init_bn(k4, hidden_dim)   # ApplyNodeFunc BN
        g3, be3 = init_bn(k5, hidden_dim)   # GIN outer BN
        params.append(dict(
            eps=jnp.zeros((1,), jnp.float32),  # learn_eps init value = 0
            w1=w1, b1=b1, g1=g1, be1=be1,
            w2=w2, b2=b2, g2=g2, be2=be2,
            g3=g3, be3=be3,
        ))
    return params


if __name__ == "__main__":
    key = jax.random.PRNGKey(0)

    N = 128          # number of graph nodes (multiple of 8 for sublane layout)
    INPUT_DIM = 16
    HIDDEN_DIM = 32
    NUM_LAYERS = 2   # GIN layers; num_mlp_layers = 2 is baked into the kernel

    key, k_adj, k_feat, k_param = jax.random.split(key, 4)

    # Random sparse-ish directed graph as a dense adjacency (no self loops).
    adj = (jax.random.uniform(k_adj, (N, N)) < 0.1).astype(jnp.float32)
    adj = adj * (1.0 - jnp.eye(N, dtype=jnp.float32))

    feats = jax.random.normal(k_feat, (N, INPUT_DIM), jnp.float32)

    layer_params = init_gin_params(k_param, NUM_LAYERS, INPUT_DIM, HIDDEN_DIM)

    out = jax.block_until_ready(gin_forward(adj, feats, layer_params))
    ref = jax.block_until_ready(gin_forward_ref(adj, feats, layer_params))

    assert out.shape == (N, HIDDEN_DIM)
    # The kernel runs the neighbor aggregation on the bf16 MXU path (per the
    # performance review), so compare against the strict-f32 reference at
    # bf16-level tolerance.  Any structural error (wrong weight wiring, wrong
    # BN stats, missing ReLU, pad-column leakage) would be orders of magnitude
    # larger than this.
    assert jnp.allclose(out, ref, atol=5e-2, rtol=5e-2), (
        f"mismatch: max abs err {jnp.max(jnp.abs(out - ref))}"
    )

    print("KERNEL_OK")
</pallas_src>

<mosaic_0001>
module attributes {stable_mosaic.version = 11 : i64} {
  func.func @gin_fused_kernel(%arg0: memref<2xf32, #tpu.memory_space<smem>>, %arg1: memref<128x128xbf16, #tpu.memory_space<vmem>>, %arg2: memref<128x128xf32, #tpu.memory_space<vmem>>, %arg3: memref<2x128x128xf32, #tpu.memory_space<vmem>>, %arg4: memref<2x128x128xf32, #tpu.memory_space<vmem>>, %arg5: memref<2x8x128xf32, #tpu.memory_space<vmem>>, %arg6: memref<128x128xf32, #tpu.memory_space<vmem>>) attributes {dimension_semantics = [], scalar_prefetch = 0 : i64, scratch_operands = 0 : i64, tpu.core_type = #tpu.core_type<tc>} {
    %c0 = arith.constant 0 : index
    %c0_0 = arith.constant 0 : index
    %0 = vector.load %arg1[%c0, %c0_0] : memref<128x128xbf16, #tpu.memory_space<vmem>>, vector<128x128xbf16>
    %cst = arith.constant 1.000000e+00 : f32
    %1 = vector.broadcast %cst : f32 to vector<8x128xf32>
    %c0_1 = arith.constant 0 : index
    %c0_2 = arith.constant 0 : index
    %2 = vector.load %arg2[%c0_1, %c0_2] : memref<128x128xf32, #tpu.memory_space<vmem>>, vector<128x128xf32>
    %c0_3 = arith.constant 0 : index
    %3 = memref.load %arg0[%c0_3] : memref<2xf32, #tpu.memory_space<smem>>
    %c0_4 = arith.constant 0 : index
    %c0_5 = arith.constant 0 : index
    %c0_6 = arith.constant 0 : index
    %4 = vector.load %arg3[%c0_4, %c0_5, %c0_6] : memref<2x128x128xf32, #tpu.memory_space<vmem>>, vector<1x128x128xf32>
    %5 = vector.shape_cast %4 : vector<1x128x128xf32> to vector<128x128xf32>
    %c0_7 = arith.constant 0 : index
    %c0_8 = arith.constant 0 : index
    %c0_9 = arith.constant 0 : index
    %6 = vector.load %arg4[%c0_7, %c0_8, %c0_9] : memref<2x128x128xf32, #tpu.memory_space<vmem>>, vector<1x128x128xf32>
    %7 = vector.shape_cast %6 : vector<1x128x128xf32> to vector<128x128xf32>
    %c0_10 = arith.constant 0 : index
    %c0_11 = arith.constant 0 : index
    %c0_12 = arith.constant 0 : index
    %8 = vector.load %arg5[%c0_10, %c0_11, %c0_12] : memref<2x8x128xf32, #tpu.memory_space<vmem>>, vector<1x8x128xf32>
    %9 = vector.shape_cast %8 : vector<1x8x128xf32> to vector<8x128xf32>
    %10 = vector.extract_strided_slice %9 {offsets = [0, 0], sizes = [1, 128], strides = [1, 1]} : vector<8x128xf32> to vector<1x128xf32>
    %11 = vector.extract_strided_slice %9 {offsets = [1, 0], sizes = [1, 128], strides = [1, 1]} : vector<8x128xf32> to vector<1x128xf32>
    %12 = vector.extract_strided_slice %9 {offsets = [2, 0], sizes = [1, 128], strides = [1, 1]} : vector<8x128xf32> to vector<1x128xf32>
    %13 = vector.extract_strided_slice %9 {offsets = [3, 0], sizes = [1, 128], strides = [1, 1]} : vector<8x128xf32> to vector<1x128xf32>
    %14 = vector.extract_strided_slice %9 {offsets = [4, 0], sizes = [1, 128], strides = [1, 1]} : vector<8x128xf32> to vector<1x128xf32>
    %15 = vector.extract_strided_slice %9 {offsets = [5, 0], sizes = [1, 128], strides = [1, 1]} : vector<8x128xf32> to vector<1x128xf32>
    %16 = vector.extract_strided_slice %9 {offsets = [6, 0], sizes = [1, 128], strides = [1, 1]} : vector<8x128xf32> to vector<1x128xf32>
    %17 = vector.extract_strided_slice %9 {offsets = [7, 0], sizes = [1, 128], strides = [1, 1]} : vector<8x128xf32> to vector<1x128xf32>
    %18 = arith.truncf %2 : vector<128x128xf32> to vector<128x128xbf16>
    %cst_13 = arith.constant dense<0.000000e+00> : vector<128x128xf32>
    %19 = tpu.matmul %0, %18, %cst_13 {dimension_numbers = #tpu.dot_dimension_numbers<[1], [0], [0], [1], [0, 0, 1, 1], [], []>} : vector<128x128xbf16>, vector<128x128xbf16>, vector<128x128xf32> -> vector<128x128xf32>
    %cst_14 = arith.constant 1.000000e+00 : f32
    %20 = arith.addf %cst_14, %3 : f32
    %21 = vector.broadcast %20 : f32 to vector<128x128xf32>
    %22 = arith.mulf %21, %2 : vector<128x128xf32>
    %23 = arith.addf %22, %19 : vector<128x128xf32>
    %cst_15 = arith.constant dense<0.000000e+00> : vector<128x128xf32>
    %24 = tpu.matmul %23, %5, %cst_15 {dimension_numbers = #tpu.dot_dimension_numbers<[1], [0], [0], [1], [0, 0, 1, 1], [], []>} : vector<128x128xf32>, vector<128x128xf32>, vector<128x128xf32> -> vector<128x128xf32>
    %25 = vector.broadcast %10 : vector<1x128xf32> to vector<128x128xf32>
    %26 = arith.addf %24, %25 : vector<128x128xf32>
    %cst_16 = arith.constant dense<0.000000e+00> : vector<8x128xf32>
    %27 = tpu.matmul %1, %26, %cst_16 {dimension_numbers = #tpu.dot_dimension_numbers<[1], [0], [0], [1], [0, 0, 1, 1], [], []>} : vector<8x128xf32>, vector<128x128xf32>, vector<8x128xf32> -> vector<8x128xf32>
    %28 = vector.extract_strided_slice %27 {offsets = [0, 0], sizes = [1, 128], strides = [1, 1]} : vector<8x128xf32> to vector<1x128xf32>
    %29 = arith.mulf %26, %26 : vector<128x128xf32>
    %cst_17 = arith.constant dense<0.000000e+00> : vector<8x128xf32>
    %30 = tpu.matmul %1, %29, %cst_17 {dimension_numbers = #tpu.dot_dimension_numbers<[1], [0], [0], [1], [0, 0, 1, 1], [], []>} : vector<8x128xf32>, vector<128x128xf32>, vector<8x128xf32> -> vector<8x128xf32>
    %31 = vector.extract_strided_slice %30 {offsets = [0, 0], sizes = [1, 128], strides = [1, 1]} : vector<8x128xf32> to vector<1x128xf32>
    %cst_18 = arith.constant 7.812500e-03 : f32
    %32 = vector.broadcast %cst_18 : f32 to vector<1x128xf32>
    %33 = arith.mulf %28, %32 : vector<1x128xf32>
    %cst_19 = arith.constant 7.812500e-03 : f32
    %34 = vector.broadcast %cst_19 : f32 to vector<1x128xf32>
    %35 = arith.mulf %31, %34 : vector<1x128xf32>
    %36 = arith.mulf %33, %33 : vector<1x128xf32>
    %37 = arith.subf %35, %36 : vector<1x128xf32>
    %cst_20 = arith.constant 0.000000e+00 : f32
    %38 = vector.broadcast %cst_20 : f32 to vector<1x128xf32>
    %39 = arith.maximumf %37, %38 : vector<1x128xf32>
    %cst_21 = arith.constant 9.99999974E-6 : f32
    %40 = vector.broadcast %cst_21 : f32 to vector<1x128xf32>
    %41 = arith.addf %39, %40 : vector<1x128xf32>
    %42 = math.rsqrt %41 : vector<1x128xf32>
    %43 = arith.mulf %11, %42 : vector<1x128xf32>
    %44 = arith.mulf %43, %33 : vector<1x128xf32>
    %45 = arith.subf %12, %44 : vector<1x128xf32>
    %46 = vector.broadcast %43 : vector<1x128xf32> to vector<128x128xf32>
    %47 = arith.mulf %26, %46 : vector<128x128xf32>
    %48 = vector.broadcast %45 : vector<1x128xf32> to vector<128x128xf32>
    %49 = arith.addf %47, %48 : vector<128x128xf32>
    %cst_22 = arith.constant 0.000000e+00 : f32
    %50 = vector.broadcast %cst_22 : f32 to vector<128x128xf32>
    %51 = arith.maximumf %49, %50 : vector<128x128xf32>
    %cst_23 = arith.constant dense<0.000000e+00> : vector<128x128xf32>
    %52 = tpu.matmul %51, %7, %cst_23 {dimension_numbers = #tpu.dot_dimension_numbers<[1], [0], [0], [1], [0, 0, 1, 1], [], []>} : vector<128x128xf32>, vector<128x128xf32>, vector<128x128xf32> -> vector<128x128xf32>
    %53 = vector.broadcast %13 : vector<1x128xf32> to vector<128x128xf32>
    %54 = arith.addf %52, %53 : vector<128x128xf32>
    %cst_24 = arith.constant dense<0.000000e+00> : vector<8x128xf32>
    %55 = tpu.matmul %1, %54, %cst_24 {dimension_numbers = #tpu.dot_dimension_numbers<[1], [0], [0], [1], [0, 0, 1, 1], [], []>} : vector<8x128xf32>, vector<128x128xf32>, vector<8x128xf32> -> vector<8x128xf32>
    %56 = vector.extract_strided_slice %55 {offsets = [0, 0], sizes = [1, 128], strides = [1, 1]} : vector<8x128xf32> to vector<1x128xf32>
    %57 = arith.mulf %54, %54 : vector<128x128xf32>
    %cst_25 = arith.constant dense<0.000000e+00> : vector<8x128xf32>
    %58 = tpu.matmul %1, %57, %cst_25 {dimension_numbers = #tpu.dot_dimension_numbers<[1], [0], [0], [1], [0, 0, 1, 1], [], []>} : vector<8x128xf32>, vector<128x128xf32>, vector<8x128xf32> -> vector<8x128xf32>
    %59 = vector.extract_strided_slice %58 {offsets = [0, 0], sizes = [1, 128], strides = [1, 1]} : vector<8x128xf32> to vector<1x128xf32>
    %cst_26 = arith.constant 7.812500e-03 : f32
    %60 = vector.broadcast %cst_26 : f32 to vector<1x128xf32>
    %61 = arith.mulf %56, %60 : vector<1x128xf32>
    %cst_27 = arith.constant 7.812500e-03 : f32
    %62 = vector.broadcast %cst_27 : f32 to vector<1x128xf32>
    %63 = arith.mulf %59, %62 : vector<1x128xf32>
    %64 = arith.mulf %61, %61 : vector<1x128xf32>
    %65 = arith.subf %63, %64 : vector<1x128xf32>
    %cst_28 = arith.constant 0.000000e+00 : f32
    %66 = vector.broadcast %cst_28 : f32 to vector<1x128xf32>
    %67 = arith.maximumf %65, %66 : vector<1x128xf32>
    %cst_29 = arith.constant 9.99999974E-6 : f32
    %68 = vector.broadcast %cst_29 : f32 to vector<1x128xf32>
    %69 = arith.addf %67, %68 : vector<1x128xf32>
    %70 = math.rsqrt %69 : vector<1x128xf32>
    %71 = arith.mulf %14, %70 : vector<1x128xf32>
    %72 = arith.mulf %71, %61 : vector<1x128xf32>
    %73 = arith.subf %15, %72 : vector<1x128xf32>
    %74 = vector.broadcast %71 : vector<1x128xf32> to vector<128x128xf32>
    %75 = arith.mulf %54, %74 : vector<128x128xf32>
    %76 = vector.broadcast %73 : vector<1x128xf32> to vector<128x128xf32>
    %77 = arith.addf %75, %76 : vector<128x128xf32>
    %cst_30 = arith.constant 0.000000e+00 : f32
    %78 = vector.broadcast %cst_30 : f32 to vector<128x128xf32>
    %79 = arith.maximumf %77, %78 : vector<128x128xf32>
    %cst_31 = arith.constant dense<0.000000e+00> : vector<8x128xf32>
    %80 = tpu.matmul %1, %79, %cst_31 {dimension_numbers = #tpu.dot_dimension_numbers<[1], [0], [0], [1], [0, 0, 1, 1], [], []>} : vector<8x128xf32>, vector<128x128xf32>, vector<8x128xf32> -> vector<8x128xf32>
    %81 = vector.extract_strided_slice %80 {offsets = [0, 0], sizes = [1, 128], strides = [1, 1]} : vector<8x128xf32> to vector<1x128xf32>
    %82 = arith.mulf %79, %79 : vector<128x128xf32>
    %cst_32 = arith.constant dense<0.000000e+00> : vector<8x128xf32>
    %83 = tpu.matmul %1, %82, %cst_32 {dimension_numbers = #tpu.dot_dimension_numbers<[1], [0], [0], [1], [0, 0, 1, 1], [], []>} : vector<8x128xf32>, vector<128x128xf32>, vector<8x128xf32> -> vector<8x128xf32>
    %84 = vector.extract_strided_slice %83 {offsets = [0, 0], sizes = [1, 128], strides = [1, 1]} : vector<8x128xf32> to vector<1x128xf32>
    %cst_33 = arith.constant 7.812500e-03 : f32
    %85 = vector.broadcast %cst_33 : f32 to vector<1x128xf32>
    %86 = arith.mulf %81, %85 : vector<1x128xf32>
    %cst_34 = arith.constant 7.812500e-03 : f32
    %87 = vector.broadcast %cst_34 : f32 to vector<1x128xf32>
    %88 = arith.mulf %84, %87 : vector<1x128xf32>
    %89 = arith.mulf %86, %86 : vector<1x128xf32>
    %90 = arith.subf %88, %89 : vector<1x128xf32>
    %cst_35 = arith.constant 0.000000e+00 : f32
    %91 = vector.broadcast %cst_35 : f32 to vector<1x128xf32>
    %92 = arith.maximumf %90, %91 : vector<1x128xf32>
    %cst_36 = arith.constant 9.99999974E-6 : f32
    %93 = vector.broadcast %cst_36 : f32 to vector<1x128xf32>
    %94 = arith.addf %92, %93 : vector<1x128xf32>
    %95 = math.rsqrt %94 : vector<1x128xf32>
    %96 = arith.mulf %16, %95 : vector<1x128xf32>
    %97 = arith.mulf %96, %86 : vector<1x128xf32>
    %98 = arith.subf %17, %97 : vector<1x128xf32>
    %99 = vector.broadcast %96 : vector<1x128xf32> to vector<128x128xf32>
    %100 = arith.mulf %79, %99 : vector<128x128xf32>
    %101 = vector.broadcast %98 : vector<1x128xf32> to vector<128x128xf32>
    %102 = arith.addf %100, %101 : vector<128x128xf32>
    %cst_37 = arith.constant 0.000000e+00 : f32
    %103 = vector.broadcast %cst_37 : f32 to vector<128x128xf32>
    %104 = arith.maximumf %102, %103 : vector<128x128xf32>
    %c1 = arith.constant 1 : index
    %105 = memref.load %arg0[%c1] : memref<2xf32, #tpu.memory_space<smem>>
    %c1_38 = arith.constant 1 : index
    %c0_39 = arith.constant 0 : index
    %c0_40 = arith.constant 0 : index
    %106 = vector.load %arg3[%c1_38, %c0_39, %c0_40] : memref<2x128x128xf32, #tpu.memory_space<vmem>>, vector<1x128x128xf32>
    %107 = vector.shape_cast %106 : vector<1x128x128xf32> to vector<128x128xf32>
    %c1_41 = arith.constant 1 : index
    %c0_42 = arith.constant 0 : index
    %c0_43 = arith.constant 0 : index
    %108 = vector.load %arg4[%c1_41, %c0_42, %c0_43] : memref<2x128x128xf32, #tpu.memory_space<vmem>>, vector<1x128x128xf32>
    %109 = vector.shape_cast %108 : vector<1x128x128xf32> to vector<128x128xf32>
    %c1_44 = arith.constant 1 : index
    %c0_45 = arith.constant 0 : index
    %c0_46 = arith.constant 0 : index
    %110 = vector.load %arg5[%c1_44, %c0_45, %c0_46] : memref<2x8x128xf32, #tpu.memory_space<vmem>>, vector<1x8x128xf32>
    %111 = vector.shape_cast %110 : vector<1x8x128xf32> to vector<8x128xf32>
    %112 = vector.extract_strided_slice %111 {offsets = [0, 0], sizes = [1, 128], strides = [1, 1]} : vector<8x128xf32> to vector<1x128xf32>
    %113 = vector.extract_strided_slice %111 {offsets = [1, 0], sizes = [1, 128], strides = [1, 1]} : vector<8x128xf32> to vector<1x128xf32>
    %114 = vector.extract_strided_slice %111 {offsets = [2, 0], sizes = [1, 128], strides = [1, 1]} : vector<8x128xf32> to vector<1x128xf32>
    %115 = vector.extract_strided_slice %111 {offsets = [3, 0], sizes = [1, 128], strides = [1, 1]} : vector<8x128xf32> to vector<1x128xf32>
    %116 = vector.extract_strided_slice %111 {offsets = [4, 0], sizes = [1, 128], strides = [1, 1]} : vector<8x128xf32> to vector<1x128xf32>
    %117 = vector.extract_strided_slice %111 {offsets = [5, 0], sizes = [1, 128], strides = [1, 1]} : vector<8x128xf32> to vector<1x128xf32>
    %118 = vector.extract_strided_slice %111 {offsets = [6, 0], sizes = [1, 128], strides = [1, 1]} : vector<8x128xf32> to vector<1x128xf32>
    %119 = vector.extract_strided_slice %111 {offsets = [7, 0], sizes = [1, 128], strides = [1, 1]} : vector<8x128xf32> to vector<1x128xf32>
    %120 = arith.truncf %104 : vector<128x128xf32> to vector<128x128xbf16>
    %cst_47 = arith.constant dense<0.000000e+00> : vector<128x128xf32>
    %121 = tpu.matmul %0, %120, %cst_47 {dimension_numbers = #tpu.dot_dimension_numbers<[1], [0], [0], [1], [0, 0, 1, 1], [], []>} : vector<128x128xbf16>, vector<128x128xbf16>, vector<128x128xf32> -> vector<128x128xf32>
    %cst_48 = arith.constant 1.000000e+00 : f32
    %122 = arith.addf %cst_48, %105 : f32
    %123 = vector.broadcast %122 : f32 to vector<128x128xf32>
    %124 = arith.mulf %123, %104 : vector<128x128xf32>
    %125 = arith.addf %124, %121 : vector<128x128xf32>
    %cst_49 = arith.constant dense<0.000000e+00> : vector<128x128xf32>
    %126 = tpu.matmul %125, %107, %cst_49 {dimension_numbers = #tpu.dot_dimension_numbers<[1], [0], [0], [1], [0, 0, 1, 1], [], []>} : vector<128x128xf32>, vector<128x128xf32>, vector<128x128xf32> -> vector<128x128xf32>
    %127 = vector.broadcast %112 : vector<1x128xf32> to vector<128x128xf32>
    %128 = arith.addf %126, %127 : vector<128x128xf32>
    %cst_50 = arith.constant dense<0.000000e+00> : vector<8x128xf32>
    %129 = tpu.matmul %1, %128, %cst_50 {dimension_numbers = #tpu.dot_dimension_numbers<[1], [0], [0], [1], [0, 0, 1, 1], [], []>} : vector<8x128xf32>, vector<128x128xf32>, vector<8x128xf32> -> vector<8x128xf32>
    %130 = vector.extract_strided_slice %129 {offsets = [0, 0], sizes = [1, 128], strides = [1, 1]} : vector<8x128xf32> to vector<1x128xf32>
    %131 = arith.mulf %128, %128 : vector<128x128xf32>
    %cst_51 = arith.constant dense<0.000000e+00> : vector<8x128xf32>
    %132 = tpu.matmul %1, %131, %cst_51 {dimension_numbers = #tpu.dot_dimension_numbers<[1], [0], [0], [1], [0, 0, 1, 1], [], []>} : vector<8x128xf32>, vector<128x128xf32>, vector<8x128xf32> -> vector<8x128xf32>
    %133 = vector.extract_strided_slice %132 {offsets = [0, 0], sizes = [1, 128], strides = [1, 1]} : vector<8x128xf32> to vector<1x128xf32>
    %cst_52 = arith.constant 7.812500e-03 : f32
    %134 = vector.broadcast %cst_52 : f32 to vector<1x128xf32>
    %135 = arith.mulf %130, %134 : vector<1x128xf32>
    %cst_53 = arith.constant 7.812500e-03 : f32
    %136 = vector.broadcast %cst_53 : f32 to vector<1x128xf32>
    %137 = arith.mulf %133, %136 : vector<1x128xf32>
    %138 = arith.mulf %135, %135 : vector<1x128xf32>
    %139 = arith.subf %137, %138 : vector<1x128xf32>
    %cst_54 = arith.constant 0.000000e+00 : f32
    %140 = vector.broadcast %cst_54 : f32 to vector<1x128xf32>
    %141 = arith.maximumf %139, %140 : vector<1x128xf32>
    %cst_55 = arith.constant 9.99999974E-6 : f32
    %142 = vector.broadcast %cst_55 : f32 to vector<1x128xf32>
    %143 = arith.addf %141, %142 : vector<1x128xf32>
    %144 = math.rsqrt %143 : vector<1x128xf32>
    %145 = arith.mulf %113, %144 : vector<1x128xf32>
    %146 = arith.mulf %145, %135 : vector<1x128xf32>
    %147 = arith.subf %114, %146 : vector<1x128xf32>
    %148 = vector.broadcast %145 : vector<1x128xf32> to vector<128x128xf32>
    %149 = arith.mulf %128, %148 : vector<128x128xf32>
    %150 = vector.broadcast %147 : vector<1x128xf32> to vector<128x128xf32>
    %151 = arith.addf %149, %150 : vector<128x128xf32>
    %cst_56 = arith.constant 0.000000e+00 : f32
    %152 = vector.broadcast %cst_56 : f32 to vector<128x128xf32>
    %153 = arith.maximumf %151, %152 : vector<128x128xf32>
    %cst_57 = arith.constant dense<0.000000e+00> : vector<128x128xf32>
    %154 = tpu.matmul %153, %109, %cst_57 {dimension_numbers = #tpu.dot_dimension_numbers<[1], [0], [0], [1], [0, 0, 1, 1], [], []>} : vector<128x128xf32>, vector<128x128xf32>, vector<128x128xf32> -> vector<128x128xf32>
    %155 = vector.broadcast %115 : vector<1x128xf32> to vector<128x128xf32>
    %156 = arith.addf %154, %155 : vector<128x128xf32>
    %cst_58 = arith.constant dense<0.000000e+00> : vector<8x128xf32>
    %157 = tpu.matmul %1, %156, %cst_58 {dimension_numbers = #tpu.dot_dimension_numbers<[1], [0], [0], [1], [0, 0, 1, 1], [], []>} : vector<8x128xf32>, vector<128x128xf32>, vector<8x128xf32> -> vector<8x128xf32>
    %158 = vector.extract_strided_slice %157 {offsets = [0, 0], sizes = [1, 128], strides = [1, 1]} : vector<8x128xf32> to vector<1x128xf32>
    %159 = arith.mulf %156, %156 : vector<128x128xf32>
    %cst_59 = arith.constant dense<0.000000e+00> : vector<8x128xf32>
    %160 = tpu.matmul %1, %159, %cst_59 {dimension_numbers = #tpu.dot_dimension_numbers<[1], [0], [0], [1], [0, 0, 1, 1], [], []>} : vector<8x128xf32>, vector<128x128xf32>, vector<8x128xf32> -> vector<8x128xf32>
    %161 = vector.extract_strided_slice %160 {offsets = [0, 0], sizes = [1, 128], strides = [1, 1]} : vector<8x128xf32> to vector<1x128xf32>
    %cst_60 = arith.constant 7.812500e-03 : f32
    %162 = vector.broadcast %cst_60 : f32 to vector<1x128xf32>
    %163 = arith.mulf %158, %162 : vector<1x128xf32>
    %cst_61 = arith.constant 7.812500e-03 : f32
    %164 = vector.broadcast %cst_61 : f32 to vector<1x128xf32>
    %165 = arith.mulf %161, %164 : vector<1x128xf32>
    %166 = arith.mulf %163, %163 : vector<1x128xf32>
    %167 = arith.subf %165, %166 : vector<1x128xf32>
    %cst_62 = arith.constant 0.000000e+00 : f32
    %168 = vector.broadcast %cst_62 : f32 to vector<1x128xf32>
    %169 = arith.maximumf %167, %168 : vector<1x128xf32>
    %cst_63 = arith.constant 9.99999974E-6 : f32
    %170 = vector.broadcast %cst_63 : f32 to vector<1x128xf32>
    %171 = arith.addf %169, %170 : vector<1x128xf32>
    %172 = math.rsqrt %171 : vector<1x128xf32>
    %173 = arith.mulf %116, %172 : vector<1x128xf32>
    %174 = arith.mulf %173, %163 : vector<1x128xf32>
    %175 = arith.subf %117, %174 : vector<1x128xf32>
    %176 = vector.broadcast %173 : vector<1x128xf32> to vector<128x128xf32>
    %177 = arith.mulf %156, %176 : vector<128x128xf32>
    %178 = vector.broadcast %175 : vector<1x128xf32> to vector<128x128xf32>
    %179 = arith.addf %177, %178 : vector<128x128xf32>
    %cst_64 = arith.constant 0.000000e+00 : f32
    %180 = vector.broadcast %cst_64 : f32 to vector<128x128xf32>
    %181 = arith.maximumf %179, %180 : vector<128x128xf32>
    %cst_65 = arith.constant dense<0.000000e+00> : vector<8x128xf32>
    %182 = tpu.matmul %1, %181, %cst_65 {dimension_numbers = #tpu.dot_dimension_numbers<[1], [0], [0], [1], [0, 0, 1, 1], [], []>} : vector<8x128xf32>, vector<128x128xf32>, vector<8x128xf32> -> vector<8x128xf32>
    %183 = vector.extract_strided_slice %182 {offsets = [0, 0], sizes = [1, 128], strides = [1, 1]} : vector<8x128xf32> to vector<1x128xf32>
    %184 = arith.mulf %181, %181 : vector<128x128xf32>
    %cst_66 = arith.constant dense<0.000000e+00> : vector<8x128xf32>
    %185 = tpu.matmul %1, %184, %cst_66 {dimension_numbers = #tpu.dot_dimension_numbers<[1], [0], [0], [1], [0, 0, 1, 1], [], []>} : vector<8x128xf32>, vector<128x128xf32>, vector<8x128xf32> -> vector<8x128xf32>
    %186 = vector.extract_strided_slice %185 {offsets = [0, 0], sizes = [1, 128], strides = [1, 1]} : vector<8x128xf32> to vector<1x128xf32>
    %cst_67 = arith.constant 7.812500e-03 : f32
    %187 = vector.broadcast %cst_67 : f32 to vector<1x128xf32>
    %188 = arith.mulf %183, %187 : vector<1x128xf32>
    %cst_68 = arith.constant 7.812500e-03 : f32
    %189 = vector.broadcast %cst_68 : f32 to vector<1x128xf32>
    %190 = arith.mulf %186, %189 : vector<1x128xf32>
    %191 = arith.mulf %188, %188 : vector<1x128xf32>
    %192 = arith.subf %190, %191 : vector<1x128xf32>
    %cst_69 = arith.constant 0.000000e+00 : f32
    %193 = vector.broadcast %cst_69 : f32 to vector<1x128xf32>
    %194 = arith.maximumf %192, %193 : vector<1x128xf32>
    %cst_70 = arith.constant 9.99999974E-6 : f32
    %195 = vector.broadcast %cst_70 : f32 to vector<1x128xf32>
    %196 = arith.addf %194, %195 : vector<1x128xf32>
    %197 = math.rsqrt %196 : vector<1x128xf32>
    %198 = arith.mulf %118, %197 : vector<1x128xf32>
    %199 = arith.mulf %198, %188 : vector<1x128xf32>
    %200 = arith.subf %119, %199 : vector<1x128xf32>
    %201 = vector.broadcast %198 : vector<1x128xf32> to vector<128x128xf32>
    %202 = arith.mulf %181, %201 : vector<128x128xf32>
    %203 = vector.broadcast %200 : vector<1x128xf32> to vector<128x128xf32>
    %204 = arith.addf %202, %203 : vector<128x128xf32>
    %cst_71 = arith.constant 0.000000e+00 : f32
    %205 = vector.broadcast %cst_71 : f32 to vector<128x128xf32>
    %206 = arith.maximumf %204, %205 : vector<128x128xf32>
    %c0_72 = arith.constant 0 : index
    %c0_73 = arith.constant 0 : index
    %207 = vector.load %arg6[%c0_72, %c0_73] : memref<128x128xf32, #tpu.memory_space<vmem>>, vector<128x128xf32>
    tpu.vector_store %arg6[%c0_72, %c0_73], %206 {strides = array<i32>} : memref<128x128xf32, #tpu.memory_space<vmem>>, vector<128x128xf32>,
    return
  }
}

</mosaic_0001>

<llo_original>
// kernel: tpu_custom_call.1
$region0: #{tpu_custom_call.1}
  #allocation0 [shape = 'u32[]', space=smem, size = 0x4, offset = 0x4, fixed_abs, tag = 'smem constant byte address 0x4 - core index']
  #allocation1 [shape = 'u32[144,128]{1,0:T(1,128)}', space=vmem, size = 0x12000, scoped, tag = 'internal scratch']
  %s0 = inlined_call_operand.hbm [shape: f32[2], index: 0, kind: input, shape index: {}]
  %s1 = inlined_call_operand.hbm [shape: bf16[128,128], index: 1, kind: input, shape index: {}]
  %s2 = inlined_call_operand.hbm [shape: f32[128,128], index: 2, kind: input, shape index: {}]
  %s3 = inlined_call_operand.hbm [shape: f32[2,128,128], index: 3, kind: input, shape index: {}]
  %s4 = inlined_call_operand.hbm [shape: f32[2,128,128], index: 4, kind: input, shape index: {}]
  %s5 = inlined_call_operand.vmem [shape: f32[2,8,128], index: 5, kind: input, shape index: {}]
  %s6 = inlined_call_operand.hbm [shape: f32[128,128], index: 6, kind: output, shape index: {}]
  %s7 = sld [smem:[#allocation0]]
  $region54: #{tpu_custom_call.1} parent=0
    _
  %s9 = ssub.s32 1, %s7
  %s10 = scalar_select 0, %s9, %s7
  $region1: #{tpu_custom_call.1} parent=0
    #allocation2 [shape = 'u8[512]{0}', space=smem, size = 0x200, scoped, tag = 'input window, operand 0, single buffered']
    #allocation3 [shape = 's32[1]{0}', space=sflag, size = 0x4, scoped, tag = 'scoped memory for tpu_custom_call.1']
    #allocation4 [shape = 's32[1]{0}', space=sflag, size = 0x4, scoped, tag = 'scoped memory for tpu_custom_call.1']
    #allocation5 [shape = 's32[1]{0}', space=sflag, size = 0x4, scoped, tag = 'scoped memory for tpu_custom_call.1']
    #allocation6 [shape = 'u8[32768]{0}', space=vmem, size = 0x8000, scoped, tag = 'input window, operand 1, single buffered']
    #allocation7 [shape = 'u8[65536]{0}', space=vmem, size = 0x10000, scoped, tag = 'input window, operand 2, single buffered']
    #allocation8 [shape = 's32[1]{0}', space=sflag, size = 0x4, scoped, tag = 'scoped memory for tpu_custom_call.1']
    #allocation9 [shape = 'u8[131072]{0}', space=vmem, size = 0x20000, scoped, tag = 'input window, operand 3, single buffered']
    #allocation10 [shape = 'u8[131072]{0}', space=vmem, size = 0x20000, scoped, tag = 'input window, operand 4, single buffered']
    #allocation11 [shape = 's32[1]{0}', space=sflag, size = 0x4, scoped, tag = 'scoped memory for tpu_custom_call.1']
    #allocation12 [shape = 'u8[65536]{0}', space=vmem, size = 0x10000, scoped, tag = 'output window, operand 0, single buffered']
    %11 = vsyncpa [#allocation5], 0
    %12 = vsyncpa [#allocation3], 0
    %13 = vsyncpa [#allocation8], 0
    %14 = vsyncpa [#allocation11], 0
    %15 = vsyncpa [#allocation4], 0
    // Predicated region
    $region2: #{tpu_custom_call.1} parent=1 // pred_check
      _
    $region3: #{tpu_custom_call.1} parent=1 // pred_check_branch
      %17 = sbr.rel (0) target = $region5
    $region4: #{tpu_custom_call.1} parent=1 // pred_region
      %s19 = ssub.s32 16, 16
      %20 = vsyncadd [#allocation5], %s19
      %23 = dma.hbm_to_smem %s0, 16, [#allocation2], [#allocation5]
    $region5: #{tpu_custom_call.1} parent=1 // pred_fallthru
      _
    // Predicated region
    $region6: #{tpu_custom_call.1} parent=1 // pred_check
      _
    $region7: #{tpu_custom_call.1} parent=1 // pred_check_branch
      %25 = sbr.rel (0) target = $region9
    $region8: #{tpu_custom_call.1} parent=1 // pred_region
      %s27 = ssub.s32 1024, 1024
      %28 = vsyncadd [#allocation3], %s27
      %s29 = sshll.u32 [#allocation6], 4
      %s30 = int_to_ptr.vmem [resolvable:$true] %s29
      %35 = dma.hbm_to_vmem [thread:$0]  %s1, 1024, %s30, [#allocation3], 64, 64, 4
    $region9: #{tpu_custom_call.1} parent=1 // pred_fallthru
      _
    // Predicated region
    $region10: #{tpu_custom_call.1} parent=1 // pred_check
      _
    $region11: #{tpu_custom_call.1} parent=1 // pred_check_branch
      %37 = sbr.rel (0) target = $region13
    $region12: #{tpu_custom_call.1} parent=1 // pred_region
      %s39 = ssub.s32 2048, 2048
      %40 = vsyncadd [#allocation8], %s39
      %s41 = sshll.u32 [#allocation7], 4
      %s42 = int_to_ptr.vmem [resolvable:$true] %s41
      %47 = dma.hbm_to_vmem [thread:$0]  %s2, 2048, %s42, [#allocation8], 128, 128, 8
    $region13: #{tpu_custom_call.1} parent=1 // pred_fallthru
      _
    // Predicated region
    $region14: #{tpu_custom_call.1} parent=1 // pred_check
      _
    $region15: #{tpu_custom_call.1} parent=1 // pred_check_branch
      %49 = sbr.rel (0) target = $region17
    $region16: #{tpu_custom_call.1} parent=1 // pred_region
      %s51 = ssub.s32 4096, 4096
      %52 = vsyncadd [#allocation8], %s51
      %s53 = sshll.u32 [#allocation9], 4
      %s54 = int_to_ptr.vmem [resolvable:$true] %s53
      %59 = dma.hbm_to_vmem [thread:$0]  %s3, 4096, %s54, [#allocation8], 128, 128, 8
    $region17: #{tpu_custom_call.1} parent=1 // pred_fallthru
      _
    // Predicated region
    $region18: #{tpu_custom_call.1} parent=1 // pred_check
      _
    $region19: #{tpu_custom_call.1} parent=1 // pred_check_branch
      %61 = sbr.rel (0) target = $region21
    $region20: #{tpu_custom_call.1} parent=1 // pred_region
      %s63 = ssub.s32 4096, 4096
      %64 = vsyncadd [#allocation11], %s63
      %s65 = sshll.u32 [#allocation10], 4
      %s66 = int_to_ptr.vmem [resolvable:$true] %s65
      %71 = dma.hbm_to_vmem [thread:$0]  %s4, 4096, %s66, [#allocation11], 128, 128, 8
    $region21: #{tpu_custom_call.1} parent=1 // pred_fallthru
      _
    // Predicated region
    $region22: #{tpu_custom_call.1} parent=1 // pred_check
      _
    $region23: #{tpu_custom_call.1} parent=1 // pred_check_branch
      %73 = sbr.rel (0) target = $region25
    $region24: #{tpu_custom_call.1} parent=1 // pred_region
      _
    $region25: #{tpu_custom_call.1} parent=1 // pred_fallthru
      _
    // Predicated region
    $region26: #{tpu_custom_call.1} parent=1 // pred_check
      _
    $region27: #{tpu_custom_call.1} parent=1 // pred_check_branch
      %75 = sbr.rel (0) target = $region29
    $region28: #{tpu_custom_call.1} parent=1 // pred_region
      %76 = dma.done [#allocation5], 16
    $region29: #{tpu_custom_call.1} parent=1 // pred_fallthru
      _
    // Predicated region
    $region30: #{tpu_custom_call.1} parent=1 // pred_check
      _
    $region31: #{tpu_custom_call.1} parent=1 // pred_check_branch
      %78 = sbr.rel (0) target = $region33
    $region32: #{tpu_custom_call.1} parent=1 // pred_region
      %79 = dma.done [#allocation3], 1024
    $region33: #{tpu_custom_call.1} parent=1 // pred_fallthru
      _
    // Predicated region
    $region34: #{tpu_custom_call.1} parent=1 // pred_check
      _
    $region35: #{tpu_custom_call.1} parent=1 // pred_check_branch
      %81 = sbr.rel (0) target = $region37
    $region36: #{tpu_custom_call.1} parent=1 // pred_region
      %82 = dma.done [#allocation8], 2048
    $region37: #{tpu_custom_call.1} parent=1 // pred_fallthru
      _
    // Predicated region
    $region38: #{tpu_custom_call.1} parent=1 // pred_check
      _
    $region39: #{tpu_custom_call.1} parent=1 // pred_check_branch
      %84 = sbr.rel (0) target = $region41
    $region40: #{tpu_custom_call.1} parent=1 // pred_region
      %85 = dma.done [#allocation8], 4096
    $region41: #{tpu_custom_call.1} parent=1 // pred_fallthru
      _
    // Predicated region
    $region42: #{tpu_custom_call.1} parent=1 // pred_check
      _
    $region43: #{tpu_custom_call.1} parent=1 // pred_check_branch
      %87 = sbr.rel (0) target = $region45
    $region44: #{tpu_custom_call.1} parent=1 // pred_region
      %88 = dma.done [#allocation11], 4096
    $region45: #{tpu_custom_call.1} parent=1 // pred_fallthru
      _
    %89 = sfence
    %v91 = vld [vmem:[#allocation6] sm:$0xf]
    %v92 = vld [vmem:[#allocation6 + $0x4] sm:$0xf]
    %v93 = vld [vmem:[#allocation6 + $0x8] sm:$0xf]
    %v94 = vld [vmem:[#allocation6 + $0xc] sm:$0xf]
    %v95 = vld [vmem:[#allocation6 + $0x10] sm:$0xf]
    %v96 = vld [vmem:[#allocation6 + $0x14] sm:$0xf]
    %v97 = vld [vmem:[#allocation6 + $0x18] sm:$0xf]
    %v98 = vld [vmem:[#allocation6 + $0x1c] sm:$0xf]
    %v99 = vld [vmem:[#allocation6 + $0x20] sm:$0xf]
    %v100 = vld [vmem:[#allocation6 + $0x24] sm:$0xf]
    %v101 = vld [vmem:[#allocation6 + $0x28] sm:$0xf]
    %v102 = vld [vmem:[#allocation6 + $0x2c] sm:$0xf]
    %v103 = vld [vmem:[#allocation6 + $0x30] sm:$0xf]
    %v104 = vld [vmem:[#allocation6 + $0x34] sm:$0xf]
    %v105 = vld [vmem:[#allocation6 + $0x38] sm:$0xf]
    %v106 = vld [vmem:[#allocation6 + $0x3c] sm:$0xf]
    %v107 = vld [vmem:[#allocation7] sm:$0xff]
    %v108 = vld [vmem:[#allocation7 + $0x8] sm:$0xff]
    %v109 = vld [vmem:[#allocation7 + $0x10] sm:$0xff]
    %v110 = vld [vmem:[#allocation7 + $0x18] sm:$0xff]
    %v111 = vld [vmem:[#allocation7 + $0x20] sm:$0xff]
    %v112 = vld [vmem:[#allocation7 + $0x28] sm:$0xff]
    %v113 = vld [vmem:[#allocation7 + $0x30] sm:$0xff]
    %v114 = vld [vmem:[#allocation7 + $0x38] sm:$0xff]
    %v115 = vld [vmem:[#allocation7 + $0x40] sm:$0xff]
    %v116 = vld [vmem:[#allocation7 + $0x48] sm:$0xff]
    %v117 = vld [vmem:[#allocation7 + $0x50] sm:$0xff]
    %v118 = vld [vmem:[#allocation7 + $0x58] sm:$0xff]
    %v119 = vld [vmem:[#allocation7 + $0x60] sm:$0xff]
    %v120 = vld [vmem:[#allocation7 + $0x68] sm:$0xff]
    %v121 = vld [vmem:[#allocation7 + $0x70] sm:$0xff]
    %v122 = vld [vmem:[#allocation7 + $0x78] sm:$0xff]
    %s123 = sld [smem:[#allocation2]]
    %v124 = vld [vmem:[#allocation9] sm:$0xff]
    %v125 = vld [vmem:[#allocation9 + $0x8] sm:$0xff]
    %v126 = vld [vmem:[#allocation9 + $0x10] sm:$0xff]
    %v127 = vld [vmem:[#allocation9 + $0x18] sm:$0xff]
    %v128 = vld [vmem:[#allocation9 + $0x20] sm:$0xff]
    %v129 = vld [vmem:[#allocation9 + $0x28] sm:$0xff]
    %v130 = vld [vmem:[#allocation9 + $0x30] sm:$0xff]
    %v131 = vld [vmem:[#allocation9 + $0x38] sm:$0xff]
    %v132 = vld [vmem:[#allocation9 + $0x40] sm:$0xff]
    %v133 = vld [vmem:[#allocation9 + $0x48] sm:$0xff]
    %v134 = vld [vmem:[#allocation9 + $0x50] sm:$0xff]
    %v135 = vld [vmem:[#allocation9 + $0x58] sm:$0xff]
    %v136 = vld [vmem:[#allocation9 + $0x60] sm:$0xff]
    %v137 = vld [vmem:[#allocation9 + $0x68] sm:$0xff]
    %v138 = vld [vmem:[#allocation9 + $0x70] sm:$0xff]
    %v139 = vld [vmem:[#allocation9 + $0x78] sm:$0xff]
    %v140 = vld [vmem:[#allocation10] sm:$0xff]
    %v141 = vld [vmem:[#allocation10 + $0x8] sm:$0xff]
    %v142 = vld [vmem:[#allocation10 + $0x10] sm:$0xff]
    %v143 = vld [vmem:[#allocation10 + $0x18] sm:$0xff]
    %v144 = vld [vmem:[#allocation10 + $0x20] sm:$0xff]
    %v145 = vld [vmem:[#allocation10 + $0x28] sm:$0xff]
    %v146 = vld [vmem:[#allocation10 + $0x30] sm:$0xff]
    %v147 = vld [vmem:[#allocation10 + $0x38] sm:$0xff]
    %v148 = vld [vmem:[#allocation10 + $0x40] sm:$0xff]
    %v149 = vld [vmem:[#allocation10 + $0x48] sm:$0xff]
    %v150 = vld [vmem:[#allocation10 + $0x50] sm:$0xff]
    %v151 = vld [vmem:[#allocation10 + $0x58] sm:$0xff]
    %v152 = vld [vmem:[#allocation10 + $0x60] sm:$0xff]
    %v153 = vld [vmem:[#allocation10 + $0x68] sm:$0xff]
    %v154 = vld [vmem:[#allocation10 + $0x70] sm:$0xff]
    %v155 = vld [vmem:[#allocation10 + $0x78] sm:$0xff]
    %v156 = vld [vmem:[%s5] sm:$0xff]
    %v157 = vpack.c.bf16 %v108, %v107
    %v158 = vpack.c.bf16 %v110, %v109
    %v159 = vpack.c.bf16 %v112, %v111
    %v160 = vpack.c.bf16 %v114, %v113
    %v161 = vpack.c.bf16 %v116, %v115
    %v162 = vpack.c.bf16 %v118, %v117
    %v163 = vpack.c.bf16 %v120, %v119
    %v164 = vpack.c.bf16 %v122, %v121
    %v181 = vunpack.c.l.b16 %v91
    %v182 = vunpack.c.l.b16 %v92
    %v183 = vunpack.c.l.b16 %v93
    %v184 = vunpack.c.l.b16 %v94
    %v185 = vunpack.c.l.b16 %v95
    %v186 = vunpack.c.l.b16 %v96
    %v187 = vunpack.c.l.b16 %v97
    %v188 = vunpack.c.l.b16 %v98
    %v189 = vunpack.c.l.b16 %v99
    %v190 = vunpack.c.l.b16 %v100
    %v191 = vunpack.c.l.b16 %v101
    %v192 = vunpack.c.l.b16 %v102
    %v193 = vunpack.c.l.b16 %v103
    %v194 = vunpack.c.l.b16 %v104
    %v195 = vunpack.c.l.b16 %v105
    %v196 = vunpack.c.l.b16 %v106
    %v197 = vpack.c.b16 %v182, %v181
    %v198 = vpack.c.b16 %v184, %v183
    %v199 = vpack.c.b16 %v186, %v185
    %v200 = vpack.c.b16 %v188, %v187
    %v201 = vpack.c.b16 %v190, %v189
    %v202 = vpack.c.b16 %v192, %v191
    %v203 = vpack.c.b16 %v194, %v193
    %v204 = vpack.c.b16 %v196, %v195
    %213 = vmatprep.subr.bf16.mxu0 0
    %214 = vmatpush1.bf16.msra.mxu0 %v157
    %215 = vmatprep.subr.bf16.mxu0 0
    %216 = vmatpush1.bf16.msra.mxu0 %v158
    %217 = vmatprep.subr.bf16.mxu0 0
    %218 = vmatpush1.bf16.msra.mxu0 %v159
    %219 = vmatprep.subr.bf16.mxu0 0
    %220 = vmatpush1.bf16.msra.mxu0 %v160
    %221 = vmatprep.subr.bf16.mxu0 0
    %222 = vmatpush1.bf16.msra.mxu0 %v161
    %223 = vmatprep.subr.bf16.mxu0 0
    %224 = vmatpush1.bf16.msra.mxu0 %v162
    %225 = vmatprep.subr.bf16.mxu0 0
    %226 = vmatpush1.bf16.msra.mxu0 %v163
    %227 = vmatprep.subr.bf16.mxu0 0
    %228 = vmatpush1.bf16.msra.mxu0 %v164
    %229 = vmatprep.subr.bf16.mxu0 0
    %230 = vmatpush1.bf16.msra.mxu0 0
    %231 = vmatprep.subr.bf16.mxu0 0
    %232 = vmatpush1.bf16.msra.mxu0 0
    %233 = vmatprep.subr.bf16.mxu0 0
    %234 = vmatpush1.bf16.msra.mxu0 0
    %235 = vmatprep.subr.bf16.mxu0 0
    %236 = vmatpush1.bf16.msra.mxu0 0
    %237 = vmatprep.subr.bf16.mxu0 0
    %238 = vmatpush1.bf16.msra.mxu0 0
    %239 = vmatprep.subr.bf16.mxu0 0
    %240 = vmatpush1.bf16.msra.mxu0 0
    %241 = vmatprep.subr.bf16.mxu0 0
    %242 = vmatpush1.bf16.msra.mxu0 0
    %243 = vmatprep.subr.bf16.mxu0 0
    %244 = vmatpush1.bf16.msra.mxu0 0
    %245 = vmatprep.mubr.bf16.mxu0 0
    %246 = vmatmul.mubr.bf16.gmra.mrb[0].mxu0 %v197
    %v247 = vpop.f32.mrb[0].mxu0
    %v248 = vadd.f32 0.0, %v247
    %v249 = vpop.f32.mrb[0].mxu0
    %v250 = vpop.f32.mrb[0].mxu0
    %v251 = vadd.f32 0.0, %v250
    %v252 = vpop.f32.mrb[0].mxu0
    %253 = vmatprep.mubr.bf16.mxu0 0
    %254 = vmatmul.mubr.bf16.gmra.mrb[0].mxu0 %v198
    %v255 = vpop.f32.mrb[0].mxu0
    %v256 = vadd.f32 0.0, %v255
    %v257 = vpop.f32.mrb[0].mxu0
    %v258 = vpop.f32.mrb[0].mxu0
    %v259 = vadd.f32 0.0, %v258
    %v260 = vpop.f32.mrb[0].mxu0
    %261 = vmatprep.mubr.bf16.mxu0 0
    %262 = vmatmul.mubr.bf16.gmra.mrb[0].mxu0 %v199
    %v263 = vpop.f32.mrb[0].mxu0
    %v264 = vadd.f32 0.0, %v263
    %v265 = vpop.f32.mrb[0].mxu0
    %v266 = vpop.f32.mrb[0].mxu0
    %v267 = vadd.f32 0.0, %v266
    %v268 = vpop.f32.mrb[0].mxu0
    %269 = vmatprep.mubr.bf16.mxu0 0
    %270 = vmatmul.mubr.bf16.gmra.mrb[0].mxu0 %v200
    %v271 = vpop.f32.mrb[0].mxu0
    %v272 = vadd.f32 0.0, %v271
    %v273 = vpop.f32.mrb[0].mxu0
    %v274 = vpop.f32.mrb[0].mxu0
    %v275 = vadd.f32 0.0, %v274
    %v276 = vpop.f32.mrb[0].mxu0
    %277 = vmatprep.mubr.bf16.mxu0 0
    %278 = vmatmul.mubr.bf16.gmra.mrb[0].mxu0 %v201
    %v279 = vpop.f32.mrb[0].mxu0
    %v280 = vadd.f32 0.0, %v279
    %v281 = vpop.f32.mrb[0].mxu0
    %v282 = vpop.f32.mrb[0].mxu0
    %v283 = vadd.f32 0.0, %v282
    %v284 = vpop.f32.mrb[0].mxu0
    %285 = vmatprep.mubr.bf16.mxu0 0
    %286 = vmatmul.mubr.bf16.gmra.mrb[0].mxu0 %v202
    %v287 = vpop.f32.mrb[0].mxu0
    %v288 = vadd.f32 0.0, %v287
    %v289 = vpop.f32.mrb[0].mxu0
    %v290 = vpop.f32.mrb[0].mxu0
    %v291 = vadd.f32 0.0, %v290
    %v292 = vpop.f32.mrb[0].mxu0
    %293 = vmatprep.mubr.bf16.mxu0 0
    %294 = vmatmul.mubr.bf16.gmra.mrb[0].mxu0 %v203
    %v295 = vpop.f32.mrb[0].mxu0
    %v296 = vadd.f32 0.0, %v295
    %v297 = vpop.f32.mrb[0].mxu0
    %v298 = vpop.f32.mrb[0].mxu0
    %v299 = vadd.f32 0.0, %v298
    %v300 = vpop.f32.mrb[0].mxu0
    %301 = vmatprep.mubr.bf16.mxu0 0
    %302 = vmatmul.mubr.bf16.gmra.mrb[0].mxu0 %v204
    %v303 = vpop.f32.mrb[0].mxu0
    %v304 = vadd.f32 0.0, %v303
    %v305 = vpop.f32.mrb[0].mxu0
    %v306 = vpop.f32.mrb[0].mxu0
    %v307 = vadd.f32 0.0, %v306
    %v308 = vpop.f32.mrb[0].mxu0
    %309 = vdwg.mxu0
    %s310 = sadd.f32 %s123, 1.0
    %v311 = vstv %s310
    %v312 = vmul.f32 %v311, %v107
    %v313 = vmul.f32 %v311, %v108
    %v314 = vmul.f32 %v311, %v109
    %v315 = vmul.f32 %v311, %v110
    %v316 = vmul.f32 %v311, %v111
    %v317 = vmul.f32 %v311, %v112
    %v318 = vmul.f32 %v311, %v113
    %v319 = vmul.f32 %v311, %v114
    %v320 = vmul.f32 %v311, %v115
    %v321 = vmul.f32 %v311, %v116
    %v322 = vmul.f32 %v311, %v117
    %v323 = vmul.f32 %v311, %v118
    %v324 = vmul.f32 %v311, %v119
    %v325 = vmul.f32 %v311, %v120
    %v326 = vmul.f32 %v311, %v121
    %v327 = vmul.f32 %v311, %v122
    %v328 = vadd.f32 %v312, %v248
    %v329 = vadd.f32 %v313, %v251
    %v330 = vadd.f32 %v314, %v256
    %v331 = vadd.f32 %v315, %v259
    %v332 = vadd.f32 %v316, %v264
    %v333 = vadd.f32 %v317, %v267
    %v334 = vadd.f32 %v318, %v272
    %v335 = vadd.f32 %v319, %v275
    %v336 = vadd.f32 %v320, %v280
    %v337 = vadd.f32 %v321, %v283
    %v338 = vadd.f32 %v322, %v288
    %v339 = vadd.f32 %v323, %v291
    %v340 = vadd.f32 %v324, %v296
    %v341 = vadd.f32 %v325, %v299
    %v342 = vadd.f32 %v326, %v304
    %v343 = vadd.f32 %v327, %v307
    %v344 = vlaneseq
    %v345 = vshrl.u32 %v344, 7
    %v346 = vsub.s32 0, %v345
    %v347 = vrot.slane %v156, %v346
    %348 = vmatprep.subr.mxu0 0.0
    %349 = vmatpush1.msra.mxu0 %v124
    %350 = vmatprep.subr.mxu0 0.0
    %351 = vmatpush1.msra.mxu0 %v125
    %352 = vmatprep.subr.mxu0 0.0
    %353 = vmatpush1.msra.mxu0 %v126
    %354 = vmatprep.subr.mxu0 0.0
    %355 = vmatpush1.msra.mxu0 %v127
    %356 = vmatprep.subr.mxu0 0.0
    %357 = vmatpush1.msra.mxu0 %v128
    %358 = vmatprep.subr.mxu0 0.0
    %359 = vmatpush1.msra.mxu0 %v129
    %360 = vmatprep.subr.mxu0 0.0
    %361 = vmatpush1.msra.mxu0 %v130
    %362 = vmatprep.subr.mxu0 0.0
    %363 = vmatpush1.msra.mxu0 %v131
    %364 = vmatprep.subr.mxu0 0.0
    %365 = vmatpush1.msra.mxu0 %v132
    %366 = vmatprep.subr.mxu0 0.0
    %367 = vmatpush1.msra.mxu0 %v133
    %368 = vmatprep.subr.mxu0 0.0
    %369 = vmatpush1.msra.mxu0 %v134
    %370 = vmatprep.subr.mxu0 0.0
    %371 = vmatpush1.msra.mxu0 %v135
    %372 = vmatprep.subr.mxu0 0.0
    %373 = vmatpush1.msra.mxu0 %v136
    %374 = vmatprep.subr.mxu0 0.0
    %375 = vmatpush1.msra.mxu0 %v137
    %376 = vmatprep.subr.mxu0 0.0
    %377 = vmatpush1.msra.mxu0 %v138
    %378 = vmatprep.subr.mxu0 0.0
    %379 = vmatpush1.msra.mxu0 %v139
    %380 = vmatprep.subr.mxu0 0.0
    %381 = vmatpush1.msra.mxu0 0.0
    %382 = vmatprep.subr.mxu0 0.0
    %383 = vmatpush1.msra.mxu0 0.0
    %384 = vmatprep.subr.mxu0 0.0
    %385 = vmatpush1.msra.mxu0 0.0
    %386 = vmatprep.subr.mxu0 0.0
    %387 = vmatpush1.msra.mxu0 0.0
    %388 = vmatprep.subr.mxu0 0.0
    %389 = vmatpush1.msra.mxu0 0.0
    %390 = vmatprep.subr.mxu0 0.0
    %391 = vmatpush1.msra.mxu0 0.0
    %392 = vmatprep.subr.mxu0 0.0
    %393 = vmatpush1.msra.mxu0 0.0
    %394 = vmatprep.subr.mxu0 0.0
    %395 = vmatpush1.msra.mxu0 0.0
    %396 = vmatprep.subr.mxu0 0.0
    %397 = vmatpush1.msra.mxu0 0.0
    %398 = vmatprep.subr.mxu0 0.0
    %399 = vmatpush1.msra.mxu0 0.0
    %400 = vmatprep.subr.mxu0 0.0
    %401 = vmatpush1.msra.mxu0 0.0
    %402 = vmatprep.subr.mxu0 0.0
    %403 = vmatpush1.msra.mxu0 0.0
    %404 = vmatprep.subr.mxu0 0.0
    %405 = vmatpush1.msra.mxu0 0.0
    %406 = vmatprep.subr.mxu0 0.0
    %407 = vmatpush1.msra.mxu0 0.0
    %408 = vmatprep.subr.mxu0 0.0
    %409 = vmatpush1.msra.mxu0 0.0
    %410 = vmatprep.subr.mxu0 0.0
    %411 = vmatpush1.msra.mxu0 0.0
    %412 = vmatprep.mubr.f32.mxu0 0.0
    %413 = vmatmul.mubr.f32.gmra.mrb[0].mxu0 %v328
    %v414 = vpop.f32.mrb[0].mxu0
    %v415 = vadd.f32 %v347, %v414
    %v416 = vpop.f32.mrb[0].mxu0
    %417 = vmatprep.mubr.f32.mxu0 0.0
    %418 = vmatmul.mubr.f32.gmra.mrb[0].mxu0 %v329
    %v419 = vpop.f32.mrb[0].mxu0
    %v420 = vadd.f32 %v347, %v419
    %v421 = vpop.f32.mrb[0].mxu0
    %422 = vmatprep.mubr.f32.mxu0 0.0
    %423 = vmatmul.mubr.f32.gmra.mrb[0].mxu0 %v330
    %v424 = vpop.f32.mrb[0].mxu0
    %v425 = vadd.f32 %v347, %v424
    %v426 = vpop.f32.mrb[0].mxu0
    %427 = vmatprep.mubr.f32.mxu0 0.0
    %428 = vmatmul.mubr.f32.gmra.mrb[0].mxu0 %v331
    %v429 = vpop.f32.mrb[0].mxu0
    %v430 = vadd.f32 %v347, %v429
    %v431 = vpop.f32.mrb[0].mxu0
    %432 = vmatprep.mubr.f32.mxu0 0.0
    %433 = vmatmul.mubr.f32.gmra.mrb[0].mxu0 %v332
    %v434 = vpop.f32.mrb[0].mxu0
    %v435 = vadd.f32 %v347, %v434
    %v436 = vpop.f32.mrb[0].mxu0
    %437 = vmatprep.mubr.f32.mxu0 0.0
    %438 = vmatmul.mubr.f32.gmra.mrb[0].mxu0 %v333
    %v439 = vpop.f32.mrb[0].mxu0
    %v440 = vadd.f32 %v347, %v439
    %v441 = vpop.f32.mrb[0].mxu0
    %442 = vmatprep.mubr.f32.mxu0 0.0
    %443 = vmatmul.mubr.f32.gmra.mrb[0].mxu0 %v334
    %v444 = vpop.f32.mrb[0].mxu0
    %v445 = vadd.f32 %v347, %v444
    %v446 = vpop.f32.mrb[0].mxu0
    %447 = vmatprep.mubr.f32.mxu0 0.0
    %448 = vmatmul.mubr.f32.gmra.mrb[0].mxu0 %v335
    %v449 = vpop.f32.mrb[0].mxu0
    %v450 = vadd.f32 %v347, %v449
    %v451 = vpop.f32.mrb[0].mxu0
    %452 = vmatprep.mubr.f32.mxu0 0.0
    %453 = vmatmul.mubr.f32.gmra.mrb[0].mxu0 %v336
    %v454 = vpop.f32.mrb[0].mxu0
    %v455 = vadd.f32 %v347, %v454
    %v456 = vpop.f32.mrb[0].mxu0
    %457 = vmatprep.mubr.f32.mxu0 0.0
    %458 = vmatmul.mubr.f32.gmra.mrb[0].mxu0 %v337
    %v459 = vpop.f32.mrb[0].mxu0
    %v460 = vadd.f32 %v347, %v459
    %v461 = vpop.f32.mrb[0].mxu0
    %462 = vmatprep.mubr.f32.mxu0 0.0
    %463 = vmatmul.mubr.f32.gmra.mrb[0].mxu0 %v338
    %v464 = vpop.f32.mrb[0].mxu0
    %v465 = vadd.f32 %v347, %v464
    %v466 = vpop.f32.mrb[0].mxu0
    %467 = vmatprep.mubr.f32.mxu0 0.0
    %468 = vmatmul.mubr.f32.gmra.mrb[0].mxu0 %v339
    %v469 = vpop.f32.mrb[0].mxu0
    %v470 = vadd.f32 %v347, %v469
    %v471 = vpop.f32.mrb[0].mxu0
    %472 = vmatprep.mubr.f32.mxu0 0.0
    %473 = vmatmul.mubr.f32.gmra.mrb[0].mxu0 %v340
    %v474 = vpop.f32.mrb[0].mxu0
    %v475 = vadd.f32 %v347, %v474
    %v476 = vpop.f32.mrb[0].mxu0
    %477 = vmatprep.mubr.f32.mxu0 0.0
    %478 = vmatmul.mubr.f32.gmra.mrb[0].mxu0 %v341
    %v479 = vpop.f32.mrb[0].mxu0
    %v480 = vadd.f32 %v347, %v479
    %v481 = vpop.f32.mrb[0].mxu0
    %482 = vmatprep.mubr.f32.mxu0 0.0
    %483 = vmatmul.mubr.f32.gmra.mrb[0].mxu0 %v342
    %v484 = vpop.f32.mrb[0].mxu0
    %v485 = vadd.f32 %v347, %v484
    %v486 = vpop.f32.mrb[0].mxu0
    %487 = vmatprep.mubr.f32.mxu0 0.0
    %488 = vmatmul.mubr.f32.gmra.mrb[0].mxu0 %v343
    %v489 = vpop.f32.mrb[0].mxu0
    %v490 = vadd.f32 %v347, %v489
    %v491 = vpop.f32.mrb[0].mxu0
    %492 = vdwg.mxu0
    %493 = vmatprep.subr.mxu0 0.0
    %494 = vmatpush1.msra.mxu0 %v415
    %495 = vmatprep.subr.mxu0 0.0
    %496 = vmatpush1.msra.mxu0 %v420
    %497 = vmatprep.subr.mxu0 0.0
    %498 = vmatpush1.msra.mxu0 %v425
    %499 = vmatprep.subr.mxu0 0.0
    %500 = vmatpush1.msra.mxu0 %v430
    %501 = vmatprep.subr.mxu0 0.0
    %502 = vmatpush1.msra.mxu0 %v435
    %503 = vmatprep.subr.mxu0 0.0
    %504 = vmatpush1.msra.mxu0 %v440
    %505 = vmatprep.subr.mxu0 0.0
    %506 = vmatpush1.msra.mxu0 %v445
    %507 = vmatprep.subr.mxu0 0.0
    %508 = vmatpush1.msra.mxu0 %v450
    %509 = vmatprep.subr.mxu0 0.0
    %510 = vmatpush1.msra.mxu0 %v455
    %511 = vmatprep.subr.mxu0 0.0
    %512 = vmatpush1.msra.mxu0 %v460
    %513 = vmatprep.subr.mxu0 0.0
    %514 = vmatpush1.msra.mxu0 %v465
    %515 = vmatprep.subr.mxu0 0.0
    %516 = vmatpush1.msra.mxu0 %v470
    %517 = vmatprep.subr.mxu0 0.0
    %518 = vmatpush1.msra.mxu0 %v475
    %519 = vmatprep.subr.mxu0 0.0
    %520 = vmatpush1.msra.mxu0 %v480
    %521 = vmatprep.subr.mxu0 0.0
    %522 = vmatpush1.msra.mxu0 %v485
    %523 = vmatprep.subr.mxu0 0.0
    %524 = vmatpush1.msra.mxu0 %v490
    %525 = vmatprep.subr.mxu0 0.0
    %526 = vmatpush1.msra.mxu0 0.0
    %527 = vmatprep.subr.mxu0 0.0
    %528 = vmatpush1.msra.mxu0 0.0
    %529 = vmatprep.subr.mxu0 0.0
    %530 = vmatpush1.msra.mxu0 0.0
    %531 = vmatprep.subr.mxu0 0.0
    %532 = vmatpush1.msra.mxu0 0.0
    %533 = vmatprep.subr.mxu0 0.0
    %534 = vmatpush1.msra.mxu0 0.0
    %535 = vmatprep.subr.mxu0 0.0
    %536 = vmatpush1.msra.mxu0 0.0
    %537 = vmatprep.subr.mxu0 0.0
    %538 = vmatpush1.msra.mxu0 0.0
    %539 = vmatprep.subr.mxu0 0.0
    %540 = vmatpush1.msra.mxu0 0.0
    %541 = vmatprep.subr.mxu0 0.0
    %542 = vmatpush1.msra.mxu0 0.0
    %543 = vmatprep.subr.mxu0 0.0
    %544 = vmatpush1.msra.mxu0 0.0
    %545 = vmatprep.subr.mxu0 0.0
    %546 = vmatpush1.msra.mxu0 0.0
    %547 = vmatprep.subr.mxu0 0.0
    %548 = vmatpush1.msra.mxu0 0.0
    %549 = vmatprep.subr.mxu0 0.0
    %550 = vmatpush1.msra.mxu0 0.0
    %551 = vmatprep.subr.mxu0 0.0
    %552 = vmatpush1.msra.mxu0 0.0
    %553 = vmatprep.subr.mxu0 0.0
    %554 = vmatpush1.msra.mxu0 0.0
    %555 = vmatprep.subr.mxu0 0.0
    %556 = vmatpush1.msra.mxu0 0.0
    %557 = vmatprep.mubr.f32.mxu0 0.0
    %558 = vmatmul.mubr.f32.gmra.mrb[0].mxu0 1.0
    %v559 = vpop.f32.mrb[0].mxu0
    %v560 = vadd.f32 0.0, %v559
    %v561 = vpop.f32.mrb[0].mxu0
    %562 = vdwg.mxu0
    %v563 = vmul.f32 %v415, %v415
    %v564 = vmul.f32 %v420, %v420
    %v565 = vmul.f32 %v425, %v425
    %v566 = vmul.f32 %v430, %v430
    %v567 = vmul.f32 %v435, %v435
    %v568 = vmul.f32 %v440, %v440
    %v569 = vmul.f32 %v445, %v445
    %v570 = vmul.f32 %v450, %v450
    %v571 = vmul.f32 %v455, %v455
    %v572 = vmul.f32 %v460, %v460
    %v573 = vmul.f32 %v465, %v465
    %v574 = vmul.f32 %v470, %v470
    %v575 = vmul.f32 %v475, %v475
    %v576 = vmul.f32 %v480, %v480
    %v577 = vmul.f32 %v485, %v485
    %v578 = vmul.f32 %v490, %v490
    %579 = vmatprep.subr.mxu0 0.0
    %580 = vmatpush1.msra.mxu0 %v563
    %581 = vmatprep.subr.mxu0 0.0
    %582 = vmatpush1.msra.mxu0 %v564
    %583 = vmatprep.subr.mxu0 0.0
    %584 = vmatpush1.msra.mxu0 %v565
    %585 = vmatprep.subr.mxu0 0.0
    %586 = vmatpush1.msra.mxu0 %v566
    %587 = vmatprep.subr.mxu0 0.0
    %588 = vmatpush1.msra.mxu0 %v567
    %589 = vmatprep.subr.mxu0 0.0
    %590 = vmatpush1.msra.mxu0 %v568
    %591 = vmatprep.subr.mxu0 0.0
    %592 = vmatpush1.msra.mxu0 %v569
    %593 = vmatprep.subr.mxu0 0.0
    %594 = vmatpush1.msra.mxu0 %v570
    %595 = vmatprep.subr.mxu0 0.0
    %596 = vmatpush1.msra.mxu0 %v571
    %597 = vmatprep.subr.mxu0 0.0
    %598 = vmatpush1.msra.mxu0 %v572
    %599 = vmatprep.subr.mxu0 0.0
    %600 = vmatpush1.msra.mxu0 %v573
    %601 = vmatprep.subr.mxu0 0.0
    %602 = vmatpush1.msra.mxu0 %v574
    %603 = vmatprep.subr.mxu0 0.0
    %604 = vmatpush1.msra.mxu0 %v575
    %605 = vmatprep.subr.mxu0 0.0
    %606 = vmatpush1.msra.mxu0 %v576
    %607 = vmatprep.subr.mxu0 0.0
    %608 = vmatpush1.msra.mxu0 %v577
    %609 = vmatprep.subr.mxu0 0.0
    %610 = vmatpush1.msra.mxu0 %v578
    %611 = vmatprep.subr.mxu0 0.0
    %612 = vmatpush1.msra.mxu0 0.0
    %613 = vmatprep.subr.mxu0 0.0
    %614 = vmatpush1.msra.mxu0 0.0
    %615 = vmatprep.subr.mxu0 0.0
    %616 = vmatpush1.msra.mxu0 0.0
    %617 = vmatprep.subr.mxu0 0.0
    %618 = vmatpush1.msra.mxu0 0.0
    %619 = vmatprep.subr.mxu0 0.0
    %620 = vmatpush1.msra.mxu0 0.0
    %621 = vmatprep.subr.mxu0 0.0
    %622 = vmatpush1.msra.mxu0 0.0
    %623 = vmatprep.subr.mxu0 0.0
    %624 = vmatpush1.msra.mxu0 0.0
    %625 = vmatprep.subr.mxu0 0.0
    %626 = vmatpush1.msra.mxu0 0.0
    %627 = vmatprep.subr.mxu0 0.0
    %628 = vmatpush1.msra.mxu0 0.0
    %629 = vmatprep.subr.mxu0 0.0
    %630 = vmatpush1.msra.mxu0 0.0
    %631 = vmatprep.subr.mxu0 0.0
    %632 = vmatpush1.msra.mxu0 0.0
    %633 = vmatprep.subr.mxu0 0.0
    %634 = vmatpush1.msra.mxu0 0.0
    %635 = vmatprep.subr.mxu0 0.0
    %636 = vmatpush1.msra.mxu0 0.0
    %637 = vmatprep.subr.mxu0 0.0
    %638 = vmatpush1.msra.mxu0 0.0
    %639 = vmatprep.subr.mxu0 0.0
    %640 = vmatpush1.msra.mxu0 0.0
    %641 = vmatprep.subr.mxu0 0.0
    %642 = vmatpush1.msra.mxu0 0.0
    %643 = vmatprep.mubr.f32.mxu0 0.0
    %644 = vmatmul.mubr.f32.gmra.mrb[0].mxu0 1.0
    %v645 = vpop.f32.mrb[0].mxu0
    %v646 = vadd.f32 0.0, %v645
    %v647 = vpop.f32.mrb[0].mxu0
    %648 = vdwg.mxu0
    %v649 = vmul.f32 %v560, 0.0078125
    %v650 = vmul.f32 %v646, 0.0078125
    %v651 = vmul.f32 %v649, %v649
    %v652 = vsub.f32 %v650, %v651
    %v653 = vmax.f32 %v652, 0.0
    %v654 = vadd.f32 %v653, 1e-05
    %v655 = vrsqrt.pop %v654
    %v657 = vrot.slane %v655, 7
    %v659 = vmul.f32 %v156, %v657
    %v661 = vrot.slane %v649, 7
    %v663 = vmul.f32 %v659, %v661
    %v665 = vrot.slane %v663, 7
    %v667 = vsub.f32 %v156, %v665
    %v668 = vlaneseq
    %v669 = vshrl.u32 %v668, 7
    %v670 = vsub.s32 1, %v669
    %v671 = vrot.slane %v659, %v670
    %v672 = vmul.f32 %v415, %v671
    %v673 = vmul.f32 %v420, %v671
    %v674 = vmul.f32 %v425, %v671
    %v675 = vmul.f32 %v430, %v671
    %v676 = vmul.f32 %v435, %v671
    %v677 = vmul.f32 %v440, %v671
    %v678 = vmul.f32 %v445, %v671
    %v679 = vmul.f32 %v450, %v671
    %v680 = vmul.f32 %v455, %v671
    %v681 = vmul.f32 %v460, %v671
    %v682 = vmul.f32 %v465, %v671
    %v683 = vmul.f32 %v470, %v671
    %v684 = vmul.f32 %v475, %v671
    %v685 = vmul.f32 %v480, %v671
    %v686 = vmul.f32 %v485, %v671
    %v687 = vmul.f32 %v490, %v671
    %v688 = vlaneseq
    %v689 = vshrl.u32 %v688, 7
    %v690 = vsub.s32 2, %v689
    %v691 = vrot.slane %v667, %v690
    %v692 = vadd.f32 %v672, %v691
    %v693 = vadd.f32 %v673, %v691
    %v694 = vadd.f32 %v674, %v691
    %v695 = vadd.f32 %v675, %v691
    %v696 = vadd.f32 %v676, %v691
    %v697 = vadd.f32 %v677, %v691
    %v698 = vadd.f32 %v678, %v691
    %v699 = vadd.f32 %v679, %v691
    %v700 = vadd.f32 %v680, %v691
    %v701 = vadd.f32 %v681, %v691
    %v702 = vadd.f32 %v682, %v691
    %v703 = vadd.f32 %v683, %v691
    %v704 = vadd.f32 %v684, %v691
    %v705 = vadd.f32 %v685, %v691
    %v706 = vadd.f32 %v686, %v691
    %v707 = vadd.f32 %v687, %v691
    %v708 = vmax.f32 %v692, 0.0
    %v709 = vmax.f32 %v693, 0.0
    %v710 = vmax.f32 %v694, 0.0
    %v711 = vmax.f32 %v695, 0.0
    %v712 = vmax.f32 %v696, 0.0
    %v713 = vmax.f32 %v697, 0.0
    %v714 = vmax.f32 %v698, 0.0
    %v715 = vmax.f32 %v699, 0.0
    %v716 = vmax.f32 %v700, 0.0
    %v717 = vmax.f32 %v701, 0.0
    %v718 = vmax.f32 %v702, 0.0
    %v719 = vmax.f32 %v703, 0.0
    %v720 = vmax.f32 %v704, 0.0
    %v721 = vmax.f32 %v705, 0.0
    %v722 = vmax.f32 %v706, 0.0
    %v723 = vmax.f32 %v707, 0.0
    %v724 = vlaneseq
    %v725 = vshrl.u32 %v724, 7
    %v726 = vsub.s32 3, %v725
    %v727 = vrot.slane %v156, %v726
    %728 = vmatprep.subr.mxu0 0.0
    %729 = vmatpush1.msra.mxu0 %v140
    %730 = vmatprep.subr.mxu0 0.0
    %731 = vmatpush1.msra.mxu0 %v141
    %732 = vmatprep.subr.mxu0 0.0
    %733 = vmatpush1.msra.mxu0 %v142
    %734 = vmatprep.subr.mxu0 0.0
    %735 = vmatpush1.msra.mxu0 %v143
    %736 = vmatprep.subr.mxu0 0.0
    %737 = vmatpush1.msra.mxu0 %v144
    %738 = vmatprep.subr.mxu0 0.0
    %739 = vmatpush1.msra.mxu0 %v145
    %740 = vmatprep.subr.mxu0 0.0
    %741 = vmatpush1.msra.mxu0 %v146
    %742 = vmatprep.subr.mxu0 0.0
    %743 = vmatpush1.msra.mxu0 %v147
    %744 = vmatprep.subr.mxu0 0.0
    %745 = vmatpush1.msra.mxu0 %v148
    %746 = vmatprep.subr.mxu0 0.0
    %747 = vmatpush1.msra.mxu0 %v149
    %748 = vmatprep.subr.mxu0 0.0
    %749 = vmatpush1.msra.mxu0 %v150
    %750 = vmatprep.subr.mxu0 0.0
    %751 = vmatpush1.msra.mxu0 %v151
    %752 = vmatprep.subr.mxu0 0.0
    %753 = vmatpush1.msra.mxu0 %v152
    %754 = vmatprep.subr.mxu0 0.0
    %755 = vmatpush1.msra.mxu0 %v153
    %756 = vmatprep.subr.mxu0 0.0
    %757 = vmatpush1.msra.mxu0 %v154
    %758 = vmatprep.subr.mxu0 0.0
    %759 = vmatpush1.msra.mxu0 %v155
    %760 = vmatprep.subr.mxu0 0.0
    %761 = vmatpush1.msra.mxu0 0.0
    %762 = vmatprep.subr.mxu0 0.0
    %763 = vmatpush1.msra.mxu0 0.0
    %764 = vmatprep.subr.mxu0 0.0
    %765 = vmatpush1.msra.mxu0 0.0
    %766 = vmatprep.subr.mxu0 0.0
    %767 = vmatpush1.msra.mxu0 0.0
    %768 = vmatprep.subr.mxu0 0.0
    %769 = vmatpush1.msra.mxu0 0.0
    %770 = vmatprep.subr.mxu0 0.0
    %771 = vmatpush1.msra.mxu0 0.0
    %772 = vmatprep.subr.mxu0 0.0
    %773 = vmatpush1.msra.mxu0 0.0
    %774 = vmatprep.subr.mxu0 0.0
    %775 = vmatpush1.msra.mxu0 0.0
    %776 = vmatprep.subr.mxu0 0.0
    %777 = vmatpush1.msra.mxu0 0.0
    %778 = vmatprep.subr.mxu0 0.0
    %779 = vmatpush1.msra.mxu0 0.0
    %780 = vmatprep.subr.mxu0 0.0
    %781 = vmatpush1.msra.mxu0 0.0
    %782 = vmatprep.subr.mxu0 0.0
    %783 = vmatpush1.msra.mxu0 0.0
    %784 = vmatprep.subr.mxu0 0.0
    %785 = vmatpush1.msra.mxu0 0.0
    %786 = vmatprep.subr.mxu0 0.0
    %787 = vmatpush1.msra.mxu0 0.0
    %788 = vmatprep.subr.mxu0 0.0
    %789 = vmatpush1.msra.mxu0 0.0
    %790 = vmatprep.subr.mxu0 0.0
    %791 = vmatpush1.msra.mxu0 0.0
    %792 = vmatprep.mubr.f32.mxu0 0.0
    %793 = vmatmul.mubr.f32.gmra.mrb[0].mxu0 %v708
    %v794 = vpop.f32.mrb[0].mxu0
    %v795 = vadd.f32 %v727, %v794
    %v796 = vpop.f32.mrb[0].mxu0
    %797 = vmatprep.mubr.f32.mxu0 0.0
    %798 = vmatmul.mubr.f32.gmra.mrb[0].mxu0 %v709
    %v799 = vpop.f32.mrb[0].mxu0
    %v800 = vadd.f32 %v727, %v799
    %v801 = vpop.f32.mrb[0].mxu0
    %802 = vmatprep.mubr.f32.mxu0 0.0
    %803 = vmatmul.mubr.f32.gmra.mrb[0].mxu0 %v710
    %v804 = vpop.f32.mrb[0].mxu0
    %v805 = vadd.f32 %v727, %v804
    %v806 = vpop.f32.mrb[0].mxu0
    %807 = vmatprep.mubr.f32.mxu0 0.0
    %808 = vmatmul.mubr.f32.gmra.mrb[0].mxu0 %v711
    %v809 = vpop.f32.mrb[0].mxu0
    %v810 = vadd.f32 %v727, %v809
    %v811 = vpop.f32.mrb[0].mxu0
    %812 = vmatprep.mubr.f32.mxu0 0.0
    %813 = vmatmul.mubr.f32.gmra.mrb[0].mxu0 %v712
    %v814 = vpop.f32.mrb[0].mxu0
    %v815 = vadd.f32 %v727, %v814
    %v816 = vpop.f32.mrb[0].mxu0
    %817 = vmatprep.mubr.f32.mxu0 0.0
    %818 = vmatmul.mubr.f32.gmra.mrb[0].mxu0 %v713
    %v819 = vpop.f32.mrb[0].mxu0
    %v820 = vadd.f32 %v727, %v819
    %v821 = vpop.f32.mrb[0].mxu0
    %822 = vmatprep.mubr.f32.mxu0 0.0
    %823 = vmatmul.mubr.f32.gmra.mrb[0].mxu0 %v714
    %v824 = vpop.f32.mrb[0].mxu0
    %v825 = vadd.f32 %v727, %v824
    %v826 = vpop.f32.mrb[0].mxu0
    %827 = vmatprep.mubr.f32.mxu0 0.0
    %828 = vmatmul.mubr.f32.gmra.mrb[0].mxu0 %v715
    %v829 = vpop.f32.mrb[0].mxu0
    %v830 = vadd.f32 %v727, %v829
    %v831 = vpop.f32.mrb[0].mxu0
    %832 = vmatprep.mubr.f32.mxu0 0.0
    %833 = vmatmul.mubr.f32.gmra.mrb[0].mxu0 %v716
    %v834 = vpop.f32.mrb[0].mxu0
    %v835 = vadd.f32 %v727, %v834
    %v836 = vpop.f32.mrb[0].mxu0
    %837 = vmatprep.mubr.f32.mxu0 0.0
    %838 = vmatmul.mubr.f32.gmra.mrb[0].mxu0 %v717
    %v839 = vpop.f32.mrb[0].mxu0
    %v840 = vadd.f32 %v727, %v839
    %v841 = vpop.f32.mrb[0].mxu0
    %842 = vmatprep.mubr.f32.mxu0 0.0
    %843 = vmatmul.mubr.f32.gmra.mrb[0].mxu0 %v718
    %v844 = vpop.f32.mrb[0].mxu0
    %v845 = vadd.f32 %v727, %v844
    %v846 = vpop.f32.mrb[0].mxu0
    %847 = vmatprep.mubr.f32.mxu0 0.0
    %848 = vmatmul.mubr.f32.gmra.mrb[0].mxu0 %v719
    %v849 = vpop.f32.mrb[0].mxu0
    %v850 = vadd.f32 %v727, %v849
    %v851 = vpop.f32.mrb[0].mxu0
    %852 = vmatprep.mubr.f32.mxu0 0.0
    %853 = vmatmul.mubr.f32.gmra.mrb[0].mxu0 %v720
    %v854 = vpop.f32.mrb[0].mxu0
    %v855 = vadd.f32 %v727, %v854
    %v856 = vpop.f32.mrb[0].mxu0
    %857 = vmatprep.mubr.f32.mxu0 0.0
    %858 = vmatmul.mubr.f32.gmra.mrb[0].mxu0 %v721
    %v859 = vpop.f32.mrb[0].mxu0
    %v860 = vadd.f32 %v727, %v859
    %v861 = vpop.f32.mrb[0].mxu0
    %862 = vmatprep.mubr.f32.mxu0 0.0
    %863 = vmatmul.mubr.f32.gmra.mrb[0].mxu0 %v722
    %v864 = vpop.f32.mrb[0].mxu0
    %v865 = vadd.f32 %v727, %v864
    %v866 = vpop.f32.mrb[0].mxu0
    %867 = vmatprep.mubr.f32.mxu0 0.0
    %868 = vmatmul.mubr.f32.gmra.mrb[0].mxu0 %v723
    %v869 = vpop.f32.mrb[0].mxu0
    %v870 = vadd.f32 %v727, %v869
    %v871 = vpop.f32.mrb[0].mxu0
    %872 = vdwg.mxu0
    %873 = vmatprep.subr.mxu0 0.0
    %874 = vmatpush1.msra.mxu0 %v795
    %875 = vmatprep.subr.mxu0 0.0
    %876 = vmatpush1.msra.mxu0 %v800
    %877 = vmatprep.subr.mxu0 0.0
    %878 = vmatpush1.msra.mxu0 %v805
    %879 = vmatprep.subr.mxu0 0.0
    %880 = vmatpush1.msra.mxu0 %v810
    %881 = vmatprep.subr.mxu0 0.0
    %882 = vmatpush1.msra.mxu0 %v815
    %883 = vmatprep.subr.mxu0 0.0
    %884 = vmatpush1.msra.mxu0 %v820
    %885 = vmatprep.subr.mxu0 0.0
    %886 = vmatpush1.msra.mxu0 %v825
    %887 = vmatprep.subr.mxu0 0.0
    %888 = vmatpush1.msra.mxu0 %v830
    %889 = vmatprep.subr.mxu0 0.0
    %890 = vmatpush1.msra.mxu0 %v835
    %891 = vmatprep.subr.mxu0 0.0
    %892 = vmatpush1.msra.mxu0 %v840
    %893 = vmatprep.subr.mxu0 0.0
    %894 = vmatpush1.msra.mxu0 %v845
    %895 = vmatprep.subr.mxu0 0.0
    %896 = vmatpush1.msra.mxu0 %v850
    %897 = vmatprep.subr.mxu0 0.0
    %898 = vmatpush1.msra.mxu0 %v855
    %899 = vmatprep.subr.mxu0 0.0
    %900 = vmatpush1.msra.mxu0 %v860
    %901 = vmatprep.subr.mxu0 0.0
    %902 = vmatpush1.msra.mxu0 %v865
    %903 = vmatprep.subr.mxu0 0.0
    %904 = vmatpush1.msra.mxu0 %v870
    %905 = vmatprep.subr.mxu0 0.0
    %906 = vmatpush1.msra.mxu0 0.0
    %907 = vmatprep.subr.mxu0 0.0
    %908 = vmatpush1.msra.mxu0 0.0
    %909 = vmatprep.subr.mxu0 0.0
    %910 = vmatpush1.msra.mxu0 0.0
    %911 = vmatprep.subr.mxu0 0.0
    %912 = vmatpush1.msra.mxu0 0.0
    %913 = vmatprep.subr.mxu0 0.0
    %914 = vmatpush1.msra.mxu0 0.0
    %915 = vmatprep.subr.mxu0 0.0
    %916 = vmatpush1.msra.mxu0 0.0
    %917 = vmatprep.subr.mxu0 0.0
    %918 = vmatpush1.msra.mxu0 0.0
    %919 = vmatprep.subr.mxu0 0.0
    %920 = vmatpush1.msra.mxu0 0.0
    %921 = vmatprep.subr.mxu0 0.0
    %922 = vmatpush1.msra.mxu0 0.0
    %923 = vmatprep.subr.mxu0 0.0
    %924 = vmatpush1.msra.mxu0 0.0
    %925 = vmatprep.subr.mxu0 0.0
    %926 = vmatpush1.msra.mxu0 0.0
    %927 = vmatprep.subr.mxu0 0.0
    %928 = vmatpush1.msra.mxu0 0.0
    %929 = vmatprep.subr.mxu0 0.0
    %930 = vmatpush1.msra.mxu0 0.0
    %931 = vmatprep.subr.mxu0 0.0
    %932 = vmatpush1.msra.mxu0 0.0
    %933 = vmatprep.subr.mxu0 0.0
    %934 = vmatpush1.msra.mxu0 0.0
    %935 = vmatprep.subr.mxu0 0.0
    %936 = vmatpush1.msra.mxu0 0.0
    %937 = vmatprep.mubr.f32.mxu0 0.0
    %938 = vmatmul.mubr.f32.gmra.mrb[0].mxu0 1.0
    %v939 = vpop.f32.mrb[0].mxu0
    %v940 = vadd.f32 0.0, %v939
    %v941 = vpop.f32.mrb[0].mxu0
    %942 = vdwg.mxu0
    %v943 = vmul.f32 %v795, %v795
    %v944 = vmul.f32 %v800, %v800
    %v945 = vmul.f32 %v805, %v805
    %v946 = vmul.f32 %v810, %v810
    %v947 = vmul.f32 %v815, %v815
    %v948 = vmul.f32 %v820, %v820
    %v949 = vmul.f32 %v825, %v825
    %v950 = vmul.f32 %v830, %v830
    %v951 = vmul.f32 %v835, %v835
    %v952 = vmul.f32 %v840, %v840
    %v953 = vmul.f32 %v845, %v845
    %v954 = vmul.f32 %v850, %v850
    %v955 = vmul.f32 %v855, %v855
    %v956 = vmul.f32 %v860, %v860
    %v957 = vmul.f32 %v865, %v865
    %v958 = vmul.f32 %v870, %v870
    %959 = vmatprep.subr.mxu0 0.0
    %960 = vmatpush1.msra.mxu0 %v943
    %961 = vmatprep.subr.mxu0 0.0
    %962 = vmatpush1.msra.mxu0 %v944
    %963 = vmatprep.subr.mxu0 0.0
    %964 = vmatpush1.msra.mxu0 %v945
    %965 = vmatprep.subr.mxu0 0.0
    %966 = vmatpush1.msra.mxu0 %v946
    %967 = vmatprep.subr.mxu0 0.0
    %968 = vmatpush1.msra.mxu0 %v947
    %969 = vmatprep.subr.mxu0 0.0
    %970 = vmatpush1.msra.mxu0 %v948
    %971 = vmatprep.subr.mxu0 0.0
    %972 = vmatpush1.msra.mxu0 %v949
    %973 = vmatprep.subr.mxu0 0.0
    %974 = vmatpush1.msra.mxu0 %v950
    %975 = vmatprep.subr.mxu0 0.0
    %976 = vmatpush1.msra.mxu0 %v951
    %977 = vmatprep.subr.mxu0 0.0
    %978 = vmatpush1.msra.mxu0 %v952
    %979 = vmatprep.subr.mxu0 0.0
    %980 = vmatpush1.msra.mxu0 %v953
    %981 = vmatprep.subr.mxu0 0.0
    %982 = vmatpush1.msra.mxu0 %v954
    %983 = vmatprep.subr.mxu0 0.0
    %984 = vmatpush1.msra.mxu0 %v955
    %985 = vmatprep.subr.mxu0 0.0
    %986 = vmatpush1.msra.mxu0 %v956
    %987 = vmatprep.subr.mxu0 0.0
    %988 = vmatpush1.msra.mxu0 %v957
    %989 = vmatprep.subr.mxu0 0.0
    %990 = vmatpush1.msra.mxu0 %v958
    %991 = vmatprep.subr.mxu0 0.0
    %992 = vmatpush1.msra.mxu0 0.0
    %993 = vmatprep.subr.mxu0 0.0
    %994 = vmatpush1.msra.mxu0 0.0
    %995 = vmatprep.subr.mxu0 0.0
    %996 = vmatpush1.msra.mxu0 0.0
    %997 = vmatprep.subr.mxu0 0.0
    %998 = vmatpush1.msra.mxu0 0.0
    %999 = vmatprep.subr.mxu0 0.0
    %1000 = vmatpush1.msra.mxu0 0.0
    %1001 = vmatprep.subr.mxu0 0.0
    %1002 = vmatpush1.msra.mxu0 0.0
    %1003 = vmatprep.subr.mxu0 0.0
    %1004 = vmatpush1.msra.mxu0 0.0
    %1005 = vmatprep.subr.mxu0 0.0
    %1006 = vmatpush1.msra.mxu0 0.0
    %1007 = vmatprep.subr.mxu0 0.0
    %1008 = vmatpush1.msra.mxu0 0.0
    %1009 = vmatprep.subr.mxu0 0.0
    %1010 = vmatpush1.msra.mxu0 0.0
    %1011 = vmatprep.subr.mxu0 0.0
    %1012 = vmatpush1.msra.mxu0 0.0
    %1013 = vmatprep.subr.mxu0 0.0
    %1014 = vmatpush1.msra.mxu0 0.0
    %1015 = vmatprep.subr.mxu0 0.0
    %1016 = vmatpush1.msra.mxu0 0.0
    %1017 = vmatprep.subr.mxu0 0.0
    %1018 = vmatpush1.msra.mxu0 0.0
    %1019 = vmatprep.subr.mxu0 0.0
    %1020 = vmatpush1.msra.mxu0 0.0
    %1021 = vmatprep.subr.mxu0 0.0
    %1022 = vmatpush1.msra.mxu0 0.0
    %1023 = vmatprep.mubr.f32.mxu0 0.0
    %1024 = vmatmul.mubr.f32.gmra.mrb[0].mxu0 1.0
    %v1025 = vpop.f32.mrb[0].mxu0
    %v1026 = vadd.f32 0.0, %v1025
    %v1027 = vpop.f32.mrb[0].mxu0
    %1028 = vdwg.mxu0
    %v1029 = vmul.f32 %v940, 0.0078125
    %v1030 = vmul.f32 %v1026, 0.0078125
    %v1031 = vmul.f32 %v1029, %v1029
    %v1032 = vsub.f32 %v1030, %v1031
    %v1033 = vmax.f32 %v1032, 0.0
    %v1034 = vadd.f32 %v1033, 1e-05
    %v1035 = vrsqrt.pop %v1034
    %v1037 = vrot.slane %v1035, 4
    %v1039 = vmul.f32 %v156, %v1037
    %v1041 = vrot.slane %v1029, 4
    %v1043 = vmul.f32 %v1039, %v1041
    %v1045 = vrot.slane %v1043, 7
    %v1047 = vsub.f32 %v156, %v1045
    %v1048 = vlaneseq
    %v1049 = vshrl.u32 %v1048, 7
    %v1050 = vsub.s32 4, %v1049
    %v1051 = vrot.slane %v1039, %v1050
    %v1052 = vmul.f32 %v795, %v1051
    %v1053 = vmul.f32 %v800, %v1051
    %v1054 = vmul.f32 %v805, %v1051
    %v1055 = vmul.f32 %v810, %v1051
    %v1056 = vmul.f32 %v815, %v1051
    %v1057 = vmul.f32 %v820, %v1051
    %v1058 = vmul.f32 %v825, %v1051
    %v1059 = vmul.f32 %v830, %v1051
    %v1060 = vmul.f32 %v835, %v1051
    %v1061 = vmul.f32 %v840, %v1051
    %v1062 = vmul.f32 %v845, %v1051
    %v1063 = vmul.f32 %v850, %v1051
    %v1064 = vmul.f32 %v855, %v1051
    %v1065 = vmul.f32 %v860, %v1051
    %v1066 = vmul.f32 %v865, %v1051
    %v1067 = vmul.f32 %v870, %v1051
    %v1068 = vlaneseq
    %v1069 = vshrl.u32 %v1068, 7
    %v1070 = vsub.s32 5, %v1069
    %v1071 = vrot.slane %v1047, %v1070
    %v1072 = vadd.f32 %v1052, %v1071
    %v1073 = vadd.f32 %v1053, %v1071
    %v1074 = vadd.f32 %v1054, %v1071
    %v1075 = vadd.f32 %v1055, %v1071
    %v1076 = vadd.f32 %v1056, %v1071
    %v1077 = vadd.f32 %v1057, %v1071
    %v1078 = vadd.f32 %v1058, %v1071
    %v1079 = vadd.f32 %v1059, %v1071
    %v1080 = vadd.f32 %v1060, %v1071
    %v1081 = vadd.f32 %v1061, %v1071
    %v1082 = vadd.f32 %v1062, %v1071
    %v1083 = vadd.f32 %v1063, %v1071
    %v1084 = vadd.f32 %v1064, %v1071
    %v1085 = vadd.f32 %v1065, %v1071
    %v1086 = vadd.f32 %v1066, %v1071
    %v1087 = vadd.f32 %v1067, %v1071
    %v1088 = vmax.f32 %v1072, 0.0
    %v1089 = vmax.f32 %v1073, 0.0
    %v1090 = vmax.f32 %v1074, 0.0
    %v1091 = vmax.f32 %v1075, 0.0
    %v1092 = vmax.f32 %v1076, 0.0
    %v1093 = vmax.f32 %v1077, 0.0
    %v1094 = vmax.f32 %v1078, 0.0
    %v1095 = vmax.f32 %v1079, 0.0
    %v1096 = vmax.f32 %v1080, 0.0
    %v1097 = vmax.f32 %v1081, 0.0
    %v1098 = vmax.f32 %v1082, 0.0
    %v1099 = vmax.f32 %v1083, 0.0
    %v1100 = vmax.f32 %v1084, 0.0
    %v1101 = vmax.f32 %v1085, 0.0
    %v1102 = vmax.f32 %v1086, 0.0
    %v1103 = vmax.f32 %v1087, 0.0
    %1104 = vmatprep.subr.mxu0 0.0
    %1105 = vmatpush1.msra.mxu0 %v1088
    %1106 = vmatprep.subr.mxu0 0.0
    %1107 = vmatpush1.msra.mxu0 %v1089
    %1108 = vmatprep.subr.mxu0 0.0
    %1109 = vmatpush1.msra.mxu0 %v1090
    %1110 = vmatprep.subr.mxu0 0.0
    %1111 = vmatpush1.msra.mxu0 %v1091
    %1112 = vmatprep.subr.mxu0 0.0
    %1113 = vmatpush1.msra.mxu0 %v1092
    %1114 = vmatprep.subr.mxu0 0.0
    %1115 = vmatpush1.msra.mxu0 %v1093
    %1116 = vmatprep.subr.mxu0 0.0
    %1117 = vmatpush1.msra.mxu0 %v1094
    %1118 = vmatprep.subr.mxu0 0.0
    %1119 = vmatpush1.msra.mxu0 %v1095
    %1120 = vmatprep.subr.mxu0 0.0
    %1121 = vmatpush1.msra.mxu0 %v1096
    %1122 = vmatprep.subr.mxu0 0.0
    %1123 = vmatpush1.msra.mxu0 %v1097
    %1124 = vmatprep.subr.mxu0 0.0
    %1125 = vmatpush1.msra.mxu0 %v1098
    %1126 = vmatprep.subr.mxu0 0.0
    %1127 = vmatpush1.msra.mxu0 %v1099
    %1128 = vmatprep.subr.mxu0 0.0
    %1129 = vmatpush1.msra.mxu0 %v1100
    %1130 = vmatprep.subr.mxu0 0.0
    %1131 = vmatpush1.msra.mxu0 %v1101
    %1132 = vmatprep.subr.mxu0 0.0
    %1133 = vmatpush1.msra.mxu0 %v1102
    %1134 = vmatprep.subr.mxu0 0.0
    %1135 = vmatpush1.msra.mxu0 %v1103
    %1136 = vmatprep.subr.mxu0 0.0
    %1137 = vmatpush1.msra.mxu0 0.0
    %1138 = vmatprep.subr.mxu0 0.0
    %1139 = vmatpush1.msra.mxu0 0.0
    %1140 = vmatprep.subr.mxu0 0.0
    %1141 = vmatpush1.msra.mxu0 0.0
    %1142 = vmatprep.subr.mxu0 0.0
    %1143 = vmatpush1.msra.mxu0 0.0
    %1144 = vmatprep.subr.mxu0 0.0
    %1145 = vmatpush1.msra.mxu0 0.0
    %1146 = vmatprep.subr.mxu0 0.0
    %1147 = vmatpush1.msra.mxu0 0.0
    %1148 = vmatprep.subr.mxu0 0.0
    %1149 = vmatpush1.msra.mxu0 0.0
    %1150 = vmatprep.subr.mxu0 0.0
    %1151 = vmatpush1.msra.mxu0 0.0
    %1152 = vmatprep.subr.mxu0 0.0
    %1153 = vmatpush1.msra.mxu0 0.0
    %1154 = vmatprep.subr.mxu0 0.0
    %1155 = vmatpush1.msra.mxu0 0.0
    %1156 = vmatprep.subr.mxu0 0.0
    %1157 = vmatpush1.msra.mxu0 0.0
    %1158 = vmatprep.subr.mxu0 0.0
    %1159 = vmatpush1.msra.mxu0 0.0
    %1160 = vmatprep.subr.mxu0 0.0
    %1161 = vmatpush1.msra.mxu0 0.0
    %1162 = vmatprep.subr.mxu0 0.0
    %1163 = vmatpush1.msra.mxu0 0.0
    %1164 = vmatprep.subr.mxu0 0.0
    %1165 = vmatpush1.msra.mxu0 0.0
    %1166 = vmatprep.subr.mxu0 0.0
    %1167 = vmatpush1.msra.mxu0 0.0
    %1168 = vmatprep.mubr.f32.mxu0 0.0
    %1169 = vmatmul.mubr.f32.gmra.mrb[0].mxu0 1.0
    %v1170 = vpop.f32.mrb[0].mxu0
    %v1171 = vadd.f32 0.0, %v1170
    %v1172 = vpop.f32.mrb[0].mxu0
    %1173 = vdwg.mxu0
    %v1174 = vmul.f32 %v1088, %v1088
    %v1175 = vmul.f32 %v1089, %v1089
    %v1176 = vmul.f32 %v1090, %v1090
    %v1177 = vmul.f32 %v1091, %v1091
    %v1178 = vmul.f32 %v1092, %v1092
    %v1179 = vmul.f32 %v1093, %v1093
    %v1180 = vmul.f32 %v1094, %v1094
    %v1181 = vmul.f32 %v1095, %v1095
    %v1182 = vmul.f32 %v1096, %v1096
    %v1183 = vmul.f32 %v1097, %v1097
    %v1184 = vmul.f32 %v1098, %v1098
    %v1185 = vmul.f32 %v1099, %v1099
    %v1186 = vmul.f32 %v1100, %v1100
    %v1187 = vmul.f32 %v1101, %v1101
    %v1188 = vmul.f32 %v1102, %v1102
    %v1189 = vmul.f32 %v1103, %v1103
    %1190 = vmatprep.subr.mxu0 0.0
    %1191 = vmatpush1.msra.mxu0 %v1174
    %1192 = vmatprep.subr.mxu0 0.0
    %1193 = vmatpush1.msra.mxu0 %v1175
    %1194 = vmatprep.subr.mxu0 0.0
    %1195 = vmatpush1.msra.mxu0 %v1176
    %1196 = vmatprep.subr.mxu0 0.0
    %1197 = vmatpush1.msra.mxu0 %v1177
    %1198 = vmatprep.subr.mxu0 0.0
    %1199 = vmatpush1.msra.mxu0 %v1178
    %1200 = vmatprep.subr.mxu0 0.0
    %1201 = vmatpush1.msra.mxu0 %v1179
    %1202 = vmatprep.subr.mxu0 0.0
    %1203 = vmatpush1.msra.mxu0 %v1180
    %1204 = vmatprep.subr.mxu0 0.0
    %1205 = vmatpush1.msra.mxu0 %v1181
    %1206 = vmatprep.subr.mxu0 0.0
    %1207 = vmatpush1.msra.mxu0 %v1182
    %1208 = vmatprep.subr.mxu0 0.0
    %1209 = vmatpush1.msra.mxu0 %v1183
    %1210 = vmatprep.subr.mxu0 0.0
    %1211 = vmatpush1.msra.mxu0 %v1184
    %1212 = vmatprep.subr.mxu0 0.0
    %1213 = vmatpush1.msra.mxu0 %v1185
    %1214 = vmatprep.subr.mxu0 0.0
    %1215 = vmatpush1.msra.mxu0 %v1186
    %1216 = vmatprep.subr.mxu0 0.0
    %1217 = vmatpush1.msra.mxu0 %v1187
    %1218 = vmatprep.subr.mxu0 0.0
    %1219 = vmatpush1.msra.mxu0 %v1188
    %1220 = vmatprep.subr.mxu0 0.0
    %1221 = vmatpush1.msra.mxu0 %v1189
    %1222 = vmatprep.subr.mxu0 0.0
    %1223 = vmatpush1.msra.mxu0 0.0
    %1224 = vmatprep.subr.mxu0 0.0
    %1225 = vmatpush1.msra.mxu0 0.0
    %1226 = vmatprep.subr.mxu0 0.0
    %1227 = vmatpush1.msra.mxu0 0.0
    %1228 = vmatprep.subr.mxu0 0.0
    %1229 = vmatpush1.msra.mxu0 0.0
    %1230 = vmatprep.subr.mxu0 0.0
    %1231 = vmatpush1.msra.mxu0 0.0
    %1232 = vmatprep.subr.mxu0 0.0
    %1233 = vmatpush1.msra.mxu0 0.0
    %1234 = vmatprep.subr.mxu0 0.0
    %1235 = vmatpush1.msra.mxu0 0.0
    %1236 = vmatprep.subr.mxu0 0.0
    %1237 = vmatpush1.msra.mxu0 0.0
    %1238 = vmatprep.subr.mxu0 0.0
    %1239 = vmatpush1.msra.mxu0 0.0
    %1240 = vmatprep.subr.mxu0 0.0
    %1241 = vmatpush1.msra.mxu0 0.0
    %1242 = vmatprep.subr.mxu0 0.0
    %1243 = vmatpush1.msra.mxu0 0.0
    %1244 = vmatprep.subr.mxu0 0.0
    %1245 = vmatpush1.msra.mxu0 0.0
    %1246 = vmatprep.subr.mxu0 0.0
    %1247 = vmatpush1.msra.mxu0 0.0
    %1248 = vmatprep.subr.mxu0 0.0
    %1249 = vmatpush1.msra.mxu0 0.0
    %1250 = vmatprep.subr.mxu0 0.0
    %1251 = vmatpush1.msra.mxu0 0.0
    %1252 = vmatprep.subr.mxu0 0.0
    %1253 = vmatpush1.msra.mxu0 0.0
    %1254 = vmatprep.mubr.f32.mxu0 0.0
    %1255 = vmatmul.mubr.f32.gmra.mrb[0].mxu0 1.0
    %v1256 = vpop.f32.mrb[0].mxu0
    %v1257 = vadd.f32 0.0, %v1256
    %v1258 = vpop.f32.mrb[0].mxu0
    %1259 = vdwg.mxu0
    %v1260 = vmul.f32 %v1171, 0.0078125
    %v1261 = vmul.f32 %v1257, 0.0078125
    %v1262 = vmul.f32 %v1260, %v1260
    %v1263 = vsub.f32 %v1261, %v1262
    %v1264 = vmax.f32 %v1263, 0.0
    %v1265 = vadd.f32 %v1264, 1e-05
    %v1266 = vrsqrt.pop %v1265
    %v1268 = vrot.slane %v1266, 2
    %v1270 = vmul.f32 %v156, %v1268
    %v1272 = vrot.slane %v1260, 2
    %v1274 = vmul.f32 %v1270, %v1272
    %v1276 = vrot.slane %v1274, 7
    %v1278 = vsub.f32 %v156, %v1276
    %v1279 = vlaneseq
    %v1280 = vshrl.u32 %v1279, 7
    %v1281 = vsub.s32 6, %v1280
    %v1282 = vrot.slane %v1270, %v1281
    %v1283 = vmul.f32 %v1088, %v1282
    %v1284 = vmul.f32 %v1089, %v1282
    %v1285 = vmul.f32 %v1090, %v1282
    %v1286 = vmul.f32 %v1091, %v1282
    %v1287 = vmul.f32 %v1092, %v1282
    %v1288 = vmul.f32 %v1093, %v1282
    %v1289 = vmul.f32 %v1094, %v1282
    %v1290 = vmul.f32 %v1095, %v1282
    %v1291 = vmul.f32 %v1096, %v1282
    %v1292 = vmul.f32 %v1097, %v1282
    %v1293 = vmul.f32 %v1098, %v1282
    %v1294 = vmul.f32 %v1099, %v1282
    %v1295 = vmul.f32 %v1100, %v1282
    %v1296 = vmul.f32 %v1101, %v1282
    %v1297 = vmul.f32 %v1102, %v1282
    %v1298 = vmul.f32 %v1103, %v1282
    %v1299 = vlaneseq
    %v1300 = vshrl.u32 %v1299, 7
    %v1301 = vsub.s32 7, %v1300
    %v1302 = vrot.slane %v1278, %v1301
    %v1303 = vadd.f32 %v1283, %v1302
    %v1304 = vadd.f32 %v1284, %v1302
    %v1305 = vadd.f32 %v1285, %v1302
    %v1306 = vadd.f32 %v1286, %v1302
    %v1307 = vadd.f32 %v1287, %v1302
    %v1308 = vadd.f32 %v1288, %v1302
    %v1309 = vadd.f32 %v1289, %v1302
    %v1310 = vadd.f32 %v1290, %v1302
    %v1311 = vadd.f32 %v1291, %v1302
    %v1312 = vadd.f32 %v1292, %v1302
    %v1313 = vadd.f32 %v1293, %v1302
    %v1314 = vadd.f32 %v1294, %v1302
    %v1315 = vadd.f32 %v1295, %v1302
    %v1316 = vadd.f32 %v1296, %v1302
    %v1317 = vadd.f32 %v1297, %v1302
    %v1318 = vadd.f32 %v1298, %v1302
    %v1319 = vmax.f32 %v1303, 0.0
    %v1320 = vmax.f32 %v1304, 0.0
    %v1321 = vmax.f32 %v1305, 0.0
    %v1322 = vmax.f32 %v1306, 0.0
    %v1323 = vmax.f32 %v1307, 0.0
    %v1324 = vmax.f32 %v1308, 0.0
    %v1325 = vmax.f32 %v1309, 0.0
    %v1326 = vmax.f32 %v1310, 0.0
    %v1327 = vmax.f32 %v1311, 0.0
    %v1328 = vmax.f32 %v1312, 0.0
    %v1329 = vmax.f32 %v1313, 0.0
    %v1330 = vmax.f32 %v1314, 0.0
    %v1331 = vmax.f32 %v1315, 0.0
    %v1332 = vmax.f32 %v1316, 0.0
    %v1333 = vmax.f32 %v1317, 0.0
    %v1334 = vmax.f32 %v1318, 0.0
    %s1335 = sld [smem:[#allocation2 + $0x1]]
    %s1336 = scalar_lea.vmem [#allocation9], 128
    %v1337 = vld [vmem:[%s1336] sm:$0xff]
    %v1338 = vld [vmem:[%s1336 + $0x8] sm:$0xff]
    %v1339 = vld [vmem:[%s1336 + $0x10] sm:$0xff]
    %v1340 = vld [vmem:[%s1336 + $0x18] sm:$0xff]
    %v1341 = vld [vmem:[%s1336 + $0x20] sm:$0xff]
    %v1342 = vld [vmem:[%s1336 + $0x28] sm:$0xff]
    %v1343 = vld [vmem:[%s1336 + $0x30] sm:$0xff]
    %v1344 = vld [vmem:[%s1336 + $0x38] sm:$0xff]
    %v1345 = vld [vmem:[%s1336 + $0x40] sm:$0xff]
    %v1346 = vld [vmem:[%s1336 + $0x48] sm:$0xff]
    %v1347 = vld [vmem:[%s1336 + $0x50] sm:$0xff]
    %v1348 = vld [vmem:[%s1336 + $0x58] sm:$0xff]
    %v1349 = vld [vmem:[%s1336 + $0x60] sm:$0xff]
    %v1350 = vld [vmem:[%s1336 + $0x68] sm:$0xff]
    %v1351 = vld [vmem:[%s1336 + $0x70] sm:$0xff]
    %v1352 = vld [vmem:[%s1336 + $0x78] sm:$0xff]
    %s1353 = scalar_lea.vmem [#allocation10], 128
    %v1354 = vld [vmem:[%s1353] sm:$0xff]
    %v1355 = vld [vmem:[%s1353 + $0x8] sm:$0xff]
    %v1356 = vld [vmem:[%s1353 + $0x10] sm:$0xff]
    %v1357 = vld [vmem:[%s1353 + $0x18] sm:$0xff]
    %v1358 = vld [vmem:[%s1353 + $0x20] sm:$0xff]
    %v1359 = vld [vmem:[%s1353 + $0x28] sm:$0xff]
    %v1360 = vld [vmem:[%s1353 + $0x30] sm:$0xff]
    %v1361 = vld [vmem:[%s1353 + $0x38] sm:$0xff]
    %v1362 = vld [vmem:[%s1353 + $0x40] sm:$0xff]
    %v1363 = vld [vmem:[%s1353 + $0x48] sm:$0xff]
    %v1364 = vld [vmem:[%s1353 + $0x50] sm:$0xff]
    %v1365 = vld [vmem:[%s1353 + $0x58] sm:$0xff]
    %v1366 = vld [vmem:[%s1353 + $0x60] sm:$0xff]
    %v1367 = vld [vmem:[%s1353 + $0x68] sm:$0xff]
    %v1368 = vld [vmem:[%s1353 + $0x70] sm:$0xff]
    %v1369 = vld [vmem:[%s1353 + $0x78] sm:$0xff]
    %s1370 = scalar_lea.vmem %s5, 8
    %v1371 = vld [vmem:[%s1370] sm:$0xff]
    %v1372 = vpack.c.bf16 %v1320, %v1319
    %v1373 = vpack.c.bf16 %v1322, %v1321
    %v1374 = vpack.c.bf16 %v1324, %v1323
    %v1375 = vpack.c.bf16 %v1326, %v1325
    %v1376 = vpack.c.bf16 %v1328, %v1327
    %v1377 = vpack.c.bf16 %v1330, %v1329
    %v1378 = vpack.c.bf16 %v1332, %v1331
    %v1379 = vpack.c.bf16 %v1334, %v1333
    %1380 = vmatprep.subr.bf16.mxu0 0
    %1381 = vmatpush1.bf16.msra.mxu0 %v1372
    %1382 = vmatprep.subr.bf16.mxu0 0
    %1383 = vmatpush1.bf16.msra.mxu0 %v1373
    %1384 = vmatprep.subr.bf16.mxu0 0
    %1385 = vmatpush1.bf16.msra.mxu0 %v1374
    %1386 = vmatprep.subr.bf16.mxu0 0
    %1387 = vmatpush1.bf16.msra.mxu0 %v1375
    %1388 = vmatprep.subr.bf16.mxu0 0
    %1389 = vmatpush1.bf16.msra.mxu0 %v1376
    %1390 = vmatprep.subr.bf16.mxu0 0
    %1391 = vmatpush1.bf16.msra.mxu0 %v1377
    %1392 = vmatprep.subr.bf16.mxu0 0
    %1393 = vmatpush1.bf16.msra.mxu0 %v1378
    %1394 = vmatprep.subr.bf16.mxu0 0
    %1395 = vmatpush1.bf16.msra.mxu0 %v1379
    %1396 = vmatprep.subr.bf16.mxu0 0
    %1397 = vmatpush1.bf16.msra.mxu0 0
    %1398 = vmatprep.subr.bf16.mxu0 0
    %1399 = vmatpush1.bf16.msra.mxu0 0
    %1400 = vmatprep.subr.bf16.mxu0 0
    %1401 = vmatpush1.bf16.msra.mxu0 0
    %1402 = vmatprep.subr.bf16.mxu0 0
    %1403 = vmatpush1.bf16.msra.mxu0 0
    %1404 = vmatprep.subr.bf16.mxu0 0
    %1405 = vmatpush1.bf16.msra.mxu0 0
    %1406 = vmatprep.subr.bf16.mxu0 0
    %1407 = vmatpush1.bf16.msra.mxu0 0
    %1408 = vmatprep.subr.bf16.mxu0 0
    %1409 = vmatpush1.bf16.msra.mxu0 0
    %1410 = vmatprep.subr.bf16.mxu0 0
    %1411 = vmatpush1.bf16.msra.mxu0 0
    %1412 = vmatprep.mubr.bf16.mxu0 0
    %1413 = vmatmul.mubr.bf16.gmra.mrb[0].mxu0 %v197
    %v1414 = vpop.f32.mrb[0].mxu0
    %v1415 = vadd.f32 0.0, %v1414
    %v1416 = vpop.f32.mrb[0].mxu0
    %v1417 = vpop.f32.mrb[0].mxu0
    %v1418 = vadd.f32 0.0, %v1417
    %v1419 = vpop.f32.mrb[0].mxu0
    %1420 = vmatprep.mubr.bf16.mxu0 0
    %1421 = vmatmul.mubr.bf16.gmra.mrb[0].mxu0 %v198
    %v1422 = vpop.f32.mrb[0].mxu0
    %v1423 = vadd.f32 0.0, %v1422
    %v1424 = vpop.f32.mrb[0].mxu0
    %v1425 = vpop.f32.mrb[0].mxu0
    %v1426 = vadd.f32 0.0, %v1425
    %v1427 = vpop.f32.mrb[0].mxu0
    %1428 = vmatprep.mubr.bf16.mxu0 0
    %1429 = vmatmul.mubr.bf16.gmra.mrb[0].mxu0 %v199
    %v1430 = vpop.f32.mrb[0].mxu0
    %v1431 = vadd.f32 0.0, %v1430
    %v1432 = vpop.f32.mrb[0].mxu0
    %v1433 = vpop.f32.mrb[0].mxu0
    %v1434 = vadd.f32 0.0, %v1433
    %v1435 = vpop.f32.mrb[0].mxu0
    %1436 = vmatprep.mubr.bf16.mxu0 0
    %1437 = vmatmul.mubr.bf16.gmra.mrb[0].mxu0 %v200
    %v1438 = vpop.f32.mrb[0].mxu0
    %v1439 = vadd.f32 0.0, %v1438
    %v1440 = vpop.f32.mrb[0].mxu0
    %v1441 = vpop.f32.mrb[0].mxu0
    %v1442 = vadd.f32 0.0, %v1441
    %v1443 = vpop.f32.mrb[0].mxu0
    %1444 = vmatprep.mubr.bf16.mxu0 0
    %1445 = vmatmul.mubr.bf16.gmra.mrb[0].mxu0 %v201
    %v1446 = vpop.f32.mrb[0].mxu0
    %v1447 = vadd.f32 0.0, %v1446
    %v1448 = vpop.f32.mrb[0].mxu0
    %v1449 = vpop.f32.mrb[0].mxu0
    %v1450 = vadd.f32 0.0, %v1449
    %v1451 = vpop.f32.mrb[0].mxu0
    %1452 = vmatprep.mubr.bf16.mxu0 0
    %1453 = vmatmul.mubr.bf16.gmra.mrb[0].mxu0 %v202
    %v1454 = vpop.f32.mrb[0].mxu0
    %v1455 = vadd.f32 0.0, %v1454
    %v1456 = vpop.f32.mrb[0].mxu0
    %v1457 = vpop.f32.mrb[0].mxu0
    %v1458 = vadd.f32 0.0, %v1457
    %v1459 = vpop.f32.mrb[0].mxu0
    %1460 = vmatprep.mubr.bf16.mxu0 0
    %1461 = vmatmul.mubr.bf16.gmra.mrb[0].mxu0 %v203
    %v1462 = vpop.f32.mrb[0].mxu0
    %v1463 = vadd.f32 0.0, %v1462
    %v1464 = vpop.f32.mrb[0].mxu0
    %v1465 = vpop.f32.mrb[0].mxu0
    %v1466 = vadd.f32 0.0, %v1465
    %v1467 = vpop.f32.mrb[0].mxu0
    %1468 = vmatprep.mubr.bf16.mxu0 0
    %1469 = vmatmul.mubr.bf16.gmra.mrb[0].mxu0 %v204
    %v1470 = vpop.f32.mrb[0].mxu0
    %v1471 = vadd.f32 0.0, %v1470
    %v1472 = vpop.f32.mrb[0].mxu0
    %v1473 = vpop.f32.mrb[0].mxu0
    %v1474 = vadd.f32 0.0, %v1473
    %v1475 = vpop.f32.mrb[0].mxu0
    %1476 = vdwg.mxu0
    %s1477 = sadd.f32 %s1335, 1.0
    %v1478 = vstv %s1477
    %v1479 = vmul.f32 %v1478, %v1319
    %v1480 = vmul.f32 %v1478, %v1320
    %v1481 = vmul.f32 %v1478, %v1321
    %v1482 = vmul.f32 %v1478, %v1322
    %v1483 = vmul.f32 %v1478, %v1323
    %v1484 = vmul.f32 %v1478, %v1324
    %v1485 = vmul.f32 %v1478, %v1325
    %v1486 = vmul.f32 %v1478, %v1326
    %v1487 = vmul.f32 %v1478, %v1327
    %v1488 = vmul.f32 %v1478, %v1328
    %v1489 = vmul.f32 %v1478, %v1329
    %v1490 = vmul.f32 %v1478, %v1330
    %v1491 = vmul.f32 %v1478, %v1331
    %v1492 = vmul.f32 %v1478, %v1332
    %v1493 = vmul.f32 %v1478, %v1333
    %v1494 = vmul.f32 %v1478, %v1334
    %v1495 = vadd.f32 %v1479, %v1415
    %v1496 = vadd.f32 %v1480, %v1418
    %v1497 = vadd.f32 %v1481, %v1423
    %v1498 = vadd.f32 %v1482, %v1426
    %v1499 = vadd.f32 %v1483, %v1431
    %v1500 = vadd.f32 %v1484, %v1434
    %v1501 = vadd.f32 %v1485, %v1439
    %v1502 = vadd.f32 %v1486, %v1442
    %v1503 = vadd.f32 %v1487, %v1447
    %v1504 = vadd.f32 %v1488, %v1450
    %v1505 = vadd.f32 %v1489, %v1455
    %v1506 = vadd.f32 %v1490, %v1458
    %v1507 = vadd.f32 %v1491, %v1463
    %v1508 = vadd.f32 %v1492, %v1466
    %v1509 = vadd.f32 %v1493, %v1471
    %v1510 = vadd.f32 %v1494, %v1474
    %v1511 = vlaneseq
    %v1512 = vshrl.u32 %v1511, 7
    %v1513 = vsub.s32 0, %v1512
    %v1514 = vrot.slane %v1371, %v1513
    %1515 = vmatprep.subr.mxu0 0.0
    %1516 = vmatpush1.msra.mxu0 %v1337
    %1517 = vmatprep.subr.mxu0 0.0
    %1518 = vmatpush1.msra.mxu0 %v1338
    %1519 = vmatprep.subr.mxu0 0.0
    %1520 = vmatpush1.msra.mxu0 %v1339
    %1521 = vmatprep.subr.mxu0 0.0
    %1522 = vmatpush1.msra.mxu0 %v1340
    %1523 = vmatprep.subr.mxu0 0.0
    %1524 = vmatpush1.msra.mxu0 %v1341
    %1525 = vmatprep.subr.mxu0 0.0
    %1526 = vmatpush1.msra.mxu0 %v1342
    %1527 = vmatprep.subr.mxu0 0.0
    %1528 = vmatpush1.msra.mxu0 %v1343
    %1529 = vmatprep.subr.mxu0 0.0
    %1530 = vmatpush1.msra.mxu0 %v1344
    %1531 = vmatprep.subr.mxu0 0.0
    %1532 = vmatpush1.msra.mxu0 %v1345
    %1533 = vmatprep.subr.mxu0 0.0
    %1534 = vmatpush1.msra.mxu0 %v1346
    %1535 = vmatprep.subr.mxu0 0.0
    %1536 = vmatpush1.msra.mxu0 %v1347
    %1537 = vmatprep.subr.mxu0 0.0
    %1538 = vmatpush1.msra.mxu0 %v1348
    %1539 = vmatprep.subr.mxu0 0.0
    %1540 = vmatpush1.msra.mxu0 %v1349
    %1541 = vmatprep.subr.mxu0 0.0
    %1542 = vmatpush1.msra.mxu0 %v1350
    %1543 = vmatprep.subr.mxu0 0.0
    %1544 = vmatpush1.msra.mxu0 %v1351
    %1545 = vmatprep.subr.mxu0 0.0
    %1546 = vmatpush1.msra.mxu0 %v1352
    %1547 = vmatprep.subr.mxu0 0.0
    %1548 = vmatpush1.msra.mxu0 0.0
    %1549 = vmatprep.subr.mxu0 0.0
    %1550 = vmatpush1.msra.mxu0 0.0
    %1551 = vmatprep.subr.mxu0 0.0
    %1552 = vmatpush1.msra.mxu0 0.0
    %1553 = vmatprep.subr.mxu0 0.0
    %1554 = vmatpush1.msra.mxu0 0.0
    %1555 = vmatprep.subr.mxu0 0.0
    %1556 = vmatpush1.msra.mxu0 0.0
    %1557 = vmatprep.subr.mxu0 0.0
    %1558 = vmatpush1.msra.mxu0 0.0
    %1559 = vmatprep.subr.mxu0 0.0
    %1560 = vmatpush1.msra.mxu0 0.0
    %1561 = vmatprep.subr.mxu0 0.0
    %1562 = vmatpush1.msra.mxu0 0.0
    %1563 = vmatprep.subr.mxu0 0.0
    %1564 = vmatpush1.msra.mxu0 0.0
    %1565 = vmatprep.subr.mxu0 0.0
    %1566 = vmatpush1.msra.mxu0 0.0
    %1567 = vmatprep.subr.mxu0 0.0
    %1568 = vmatpush1.msra.mxu0 0.0
    %1569 = vmatprep.subr.mxu0 0.0
    %1570 = vmatpush1.msra.mxu0 0.0
    %1571 = vmatprep.subr.mxu0 0.0
    %1572 = vmatpush1.msra.mxu0 0.0
    %1573 = vmatprep.subr.mxu0 0.0
    %1574 = vmatpush1.msra.mxu0 0.0
    %1575 = vmatprep.subr.mxu0 0.0
    %1576 = vmatpush1.msra.mxu0 0.0
    %1577 = vmatprep.subr.mxu0 0.0
    %1578 = vmatpush1.msra.mxu0 0.0
    %1579 = vmatprep.mubr.f32.mxu0 0.0
    %1580 = vmatmul.mubr.f32.gmra.mrb[0].mxu0 %v1495
    %v1581 = vpop.f32.mrb[0].mxu0
    %v1582 = vadd.f32 %v1514, %v1581
    %v1583 = vpop.f32.mrb[0].mxu0
    %1584 = vmatprep.mubr.f32.mxu0 0.0
    %1585 = vmatmul.mubr.f32.gmra.mrb[0].mxu0 %v1496
    %v1586 = vpop.f32.mrb[0].mxu0
    %v1587 = vadd.f32 %v1514, %v1586
    %v1588 = vpop.f32.mrb[0].mxu0
    %1589 = vmatprep.mubr.f32.mxu0 0.0
    %1590 = vmatmul.mubr.f32.gmra.mrb[0].mxu0 %v1497
    %v1591 = vpop.f32.mrb[0].mxu0
    %v1592 = vadd.f32 %v1514, %v1591
    %v1593 = vpop.f32.mrb[0].mxu0
    %1594 = vmatprep.mubr.f32.mxu0 0.0
    %1595 = vmatmul.mubr.f32.gmra.mrb[0].mxu0 %v1498
    %v1596 = vpop.f32.mrb[0].mxu0
    %v1597 = vadd.f32 %v1514, %v1596
    %v1598 = vpop.f32.mrb[0].mxu0
    %1599 = vmatprep.mubr.f32.mxu0 0.0
    %1600 = vmatmul.mubr.f32.gmra.mrb[0].mxu0 %v1499
    %v1601 = vpop.f32.mrb[0].mxu0
    %v1602 = vadd.f32 %v1514, %v1601
    %v1603 = vpop.f32.mrb[0].mxu0
    %1604 = vmatprep.mubr.f32.mxu0 0.0
    %1605 = vmatmul.mubr.f32.gmra.mrb[0].mxu0 %v1500
    %v1606 = vpop.f32.mrb[0].mxu0
    %v1607 = vadd.f32 %v1514, %v1606
    %v1608 = vpop.f32.mrb[0].mxu0
    %1609 = vmatprep.mubr.f32.mxu0 0.0
    %1610 = vmatmul.mubr.f32.gmra.mrb[0].mxu0 %v1501
    %v1611 = vpop.f32.mrb[0].mxu0
    %v1612 = vadd.f32 %v1514, %v1611
    %v1613 = vpop.f32.mrb[0].mxu0
    %1614 = vmatprep.mubr.f32.mxu0 0.0
    %1615 = vmatmul.mubr.f32.gmra.mrb[0].mxu0 %v1502
    %v1616 = vpop.f32.mrb[0].mxu0
    %v1617 = vadd.f32 %v1514, %v1616
    %v1618 = vpop.f32.mrb[0].mxu0
    %1619 = vmatprep.mubr.f32.mxu0 0.0
    %1620 = vmatmul.mubr.f32.gmra.mrb[0].mxu0 %v1503
    %v1621 = vpop.f32.mrb[0].mxu0
    %v1622 = vadd.f32 %v1514, %v1621
    %v1623 = vpop.f32.mrb[0].mxu0
    %1624 = vmatprep.mubr.f32.mxu0 0.0
    %1625 = vmatmul.mubr.f32.gmra.mrb[0].mxu0 %v1504
    %v1626 = vpop.f32.mrb[0].mxu0
    %v1627 = vadd.f32 %v1514, %v1626
    %v1628 = vpop.f32.mrb[0].mxu0
    %1629 = vmatprep.mubr.f32.mxu0 0.0
    %1630 = vmatmul.mubr.f32.gmra.mrb[0].mxu0 %v1505
    %v1631 = vpop.f32.mrb[0].mxu0
    %v1632 = vadd.f32 %v1514, %v1631
    %v1633 = vpop.f32.mrb[0].mxu0
    %1634 = vmatprep.mubr.f32.mxu0 0.0
    %1635 = vmatmul.mubr.f32.gmra.mrb[0].mxu0 %v1506
    %v1636 = vpop.f32.mrb[0].mxu0
    %v1637 = vadd.f32 %v1514, %v1636
    %v1638 = vpop.f32.mrb[0].mxu0
    %1639 = vmatprep.mubr.f32.mxu0 0.0
    %1640 = vmatmul.mubr.f32.gmra.mrb[0].mxu0 %v1507
    %v1641 = vpop.f32.mrb[0].mxu0
    %v1642 = vadd.f32 %v1514, %v1641
    %v1643 = vpop.f32.mrb[0].mxu0
    %1644 = vmatprep.mubr.f32.mxu0 0.0
    %1645 = vmatmul.mubr.f32.gmra.mrb[0].mxu0 %v1508
    %v1646 = vpop.f32.mrb[0].mxu0
    %v1647 = vadd.f32 %v1514, %v1646
    %v1648 = vpop.f32.mrb[0].mxu0
    %1649 = vmatprep.mubr.f32.mxu0 0.0
    %1650 = vmatmul.mubr.f32.gmra.mrb[0].mxu0 %v1509
    %v1651 = vpop.f32.mrb[0].mxu0
    %v1652 = vadd.f32 %v1514, %v1651
    %v1653 = vpop.f32.mrb[0].mxu0
    %1654 = vmatprep.mubr.f32.mxu0 0.0
    %1655 = vmatmul.mubr.f32.gmra.mrb[0].mxu0 %v1510
    %v1656 = vpop.f32.mrb[0].mxu0
    %v1657 = vadd.f32 %v1514, %v1656
    %v1658 = vpop.f32.mrb[0].mxu0
    %1659 = vdwg.mxu0
    %1660 = vmatprep.subr.mxu0 0.0
    %1661 = vmatpush1.msra.mxu0 %v1582
    %1662 = vmatprep.subr.mxu0 0.0
    %1663 = vmatpush1.msra.mxu0 %v1587
    %1664 = vmatprep.subr.mxu0 0.0
    %1665 = vmatpush1.msra.mxu0 %v1592
    %1666 = vmatprep.subr.mxu0 0.0
    %1667 = vmatpush1.msra.mxu0 %v1597
    %1668 = vmatprep.subr.mxu0 0.0
    %1669 = vmatpush1.msra.mxu0 %v1602
    %1670 = vmatprep.subr.mxu0 0.0
    %1671 = vmatpush1.msra.mxu0 %v1607
    %1672 = vmatprep.subr.mxu0 0.0
    %1673 = vmatpush1.msra.mxu0 %v1612
    %1674 = vmatprep.subr.mxu0 0.0
    %1675 = vmatpush1.msra.mxu0 %v1617
    %1676 = vmatprep.subr.mxu0 0.0
    %1677 = vmatpush1.msra.mxu0 %v1622
    %1678 = vmatprep.subr.mxu0 0.0
    %1679 = vmatpush1.msra.mxu0 %v1627
    %1680 = vmatprep.subr.mxu0 0.0
    %1681 = vmatpush1.msra.mxu0 %v1632
    %1682 = vmatprep.subr.mxu0 0.0
    %1683 = vmatpush1.msra.mxu0 %v1637
    %1684 = vmatprep.subr.mxu0 0.0
    %1685 = vmatpush1.msra.mxu0 %v1642
    %1686 = vmatprep.subr.mxu0 0.0
    %1687 = vmatpush1.msra.mxu0 %v1647
    %1688 = vmatprep.subr.mxu0 0.0
    %1689 = vmatpush1.msra.mxu0 %v1652
    %1690 = vmatprep.subr.mxu0 0.0
    %1691 = vmatpush1.msra.mxu0 %v1657
    %1692 = vmatprep.subr.mxu0 0.0
    %1693 = vmatpush1.msra.mxu0 0.0
    %1694 = vmatprep.subr.mxu0 0.0
    %1695 = vmatpush1.msra.mxu0 0.0
    %1696 = vmatprep.subr.mxu0 0.0
    %1697 = vmatpush1.msra.mxu0 0.0
    %1698 = vmatprep.subr.mxu0 0.0
    %1699 = vmatpush1.msra.mxu0 0.0
    %1700 = vmatprep.subr.mxu0 0.0
    %1701 = vmatpush1.msra.mxu0 0.0
    %1702 = vmatprep.subr.mxu0 0.0
    %1703 = vmatpush1.msra.mxu0 0.0
    %1704 = vmatprep.subr.mxu0 0.0
    %1705 = vmatpush1.msra.mxu0 0.0
    %1706 = vmatprep.subr.mxu0 0.0
    %1707 = vmatpush1.msra.mxu0 0.0
    %1708 = vmatprep.subr.mxu0 0.0
    %1709 = vmatpush1.msra.mxu0 0.0
    %1710 = vmatprep.subr.mxu0 0.0
    %1711 = vmatpush1.msra.mxu0 0.0
    %1712 = vmatprep.subr.mxu0 0.0
    %1713 = vmatpush1.msra.mxu0 0.0
    %1714 = vmatprep.subr.mxu0 0.0
    %1715 = vmatpush1.msra.mxu0 0.0
    %1716 = vmatprep.subr.mxu0 0.0
    %1717 = vmatpush1.msra.mxu0 0.0
    %1718 = vmatprep.subr.mxu0 0.0
    %1719 = vmatpush1.msra.mxu0 0.0
    %1720 = vmatprep.subr.mxu0 0.0
    %1721 = vmatpush1.msra.mxu0 0.0
    %1722 = vmatprep.subr.mxu0 0.0
    %1723 = vmatpush1.msra.mxu0 0.0
    %1724 = vmatprep.mubr.f32.mxu0 0.0
    %1725 = vmatmul.mubr.f32.gmra.mrb[0].mxu0 1.0
    %v1726 = vpop.f32.mrb[0].mxu0
    %v1727 = vadd.f32 0.0, %v1726
    %v1728 = vpop.f32.mrb[0].mxu0
    %1729 = vdwg.mxu0
    %v1730 = vmul.f32 %v1582, %v1582
    %v1731 = vmul.f32 %v1587, %v1587
    %v1732 = vmul.f32 %v1592, %v1592
    %v1733 = vmul.f32 %v1597, %v1597
    %v1734 = vmul.f32 %v1602, %v1602
    %v1735 = vmul.f32 %v1607, %v1607
    %v1736 = vmul.f32 %v1612, %v1612
    %v1737 = vmul.f32 %v1617, %v1617
    %v1738 = vmul.f32 %v1622, %v1622
    %v1739 = vmul.f32 %v1627, %v1627
    %v1740 = vmul.f32 %v1632, %v1632
    %v1741 = vmul.f32 %v1637, %v1637
    %v1742 = vmul.f32 %v1642, %v1642
    %v1743 = vmul.f32 %v1647, %v1647
    %v1744 = vmul.f32 %v1652, %v1652
    %v1745 = vmul.f32 %v1657, %v1657
    %1746 = vmatprep.subr.mxu0 0.0
    %1747 = vmatpush1.msra.mxu0 %v1730
    %1748 = vmatprep.subr.mxu0 0.0
    %1749 = vmatpush1.msra.mxu0 %v1731
    %1750 = vmatprep.subr.mxu0 0.0
    %1751 = vmatpush1.msra.mxu0 %v1732
    %1752 = vmatprep.subr.mxu0 0.0
    %1753 = vmatpush1.msra.mxu0 %v1733
    %1754 = vmatprep.subr.mxu0 0.0
    %1755 = vmatpush1.msra.mxu0 %v1734
    %1756 = vmatprep.subr.mxu0 0.0
    %1757 = vmatpush1.msra.mxu0 %v1735
    %1758 = vmatprep.subr.mxu0 0.0
    %1759 = vmatpush1.msra.mxu0 %v1736
    %1760 = vmatprep.subr.mxu0 0.0
    %1761 = vmatpush1.msra.mxu0 %v1737
    %1762 = vmatprep.subr.mxu0 0.0
    %1763 = vmatpush1.msra.mxu0 %v1738
    %1764 = vmatprep.subr.mxu0 0.0
    %1765 = vmatpush1.msra.mxu0 %v1739
    %1766 = vmatprep.subr.mxu0 0.0
    %1767 = vmatpush1.msra.mxu0 %v1740
    %1768 = vmatprep.subr.mxu0 0.0
    %1769 = vmatpush1.msra.mxu0 %v1741
    %1770 = vmatprep.subr.mxu0 0.0
    %1771 = vmatpush1.msra.mxu0 %v1742
    %1772 = vmatprep.subr.mxu0 0.0
    %1773 = vmatpush1.msra.mxu0 %v1743
    %1774 = vmatprep.subr.mxu0 0.0
    %1775 = vmatpush1.msra.mxu0 %v1744
    %1776 = vmatprep.subr.mxu0 0.0
    %1777 = vmatpush1.msra.mxu0 %v1745
    %1778 = vmatprep.subr.mxu0 0.0
    %1779 = vmatpush1.msra.mxu0 0.0
    %1780 = vmatprep.subr.mxu0 0.0
    %1781 = vmatpush1.msra.mxu0 0.0
    %1782 = vmatprep.subr.mxu0 0.0
    %1783 = vmatpush1.msra.mxu0 0.0
    %1784 = vmatprep.subr.mxu0 0.0
    %1785 = vmatpush1.msra.mxu0 0.0
    %1786 = vmatprep.subr.mxu0 0.0
    %1787 = vmatpush1.msra.mxu0 0.0
    %1788 = vmatprep.subr.mxu0 0.0
    %1789 = vmatpush1.msra.mxu0 0.0
    %1790 = vmatprep.subr.mxu0 0.0
    %1791 = vmatpush1.msra.mxu0 0.0
    %1792 = vmatprep.subr.mxu0 0.0
    %1793 = vmatpush1.msra.mxu0 0.0
    %1794 = vmatprep.subr.mxu0 0.0
    %1795 = vmatpush1.msra.mxu0 0.0
    %1796 = vmatprep.subr.mxu0 0.0
    %1797 = vmatpush1.msra.mxu0 0.0
    %1798 = vmatprep.subr.mxu0 0.0
    %1799 = vmatpush1.msra.mxu0 0.0
    %1800 = vmatprep.subr.mxu0 0.0
    %1801 = vmatpush1.msra.mxu0 0.0
    %1802 = vmatprep.subr.mxu0 0.0
    %1803 = vmatpush1.msra.mxu0 0.0
    %1804 = vmatprep.subr.mxu0 0.0
    %1805 = vmatpush1.msra.mxu0 0.0
    %1806 = vmatprep.subr.mxu0 0.0
    %1807 = vmatpush1.msra.mxu0 0.0
    %1808 = vmatprep.subr.mxu0 0.0
    %1809 = vmatpush1.msra.mxu0 0.0
    %1810 = vmatprep.mubr.f32.mxu0 0.0
    %1811 = vmatmul.mubr.f32.gmra.mrb[0].mxu0 1.0
    %v1812 = vpop.f32.mrb[0].mxu0
    %v1813 = vadd.f32 0.0, %v1812
    %v1814 = vpop.f32.mrb[0].mxu0
    %1815 = vdwg.mxu0
    %v1816 = vmul.f32 %v1727, 0.0078125
    %v1817 = vmul.f32 %v1813, 0.0078125
    %v1818 = vmul.f32 %v1816, %v1816
    %v1819 = vsub.f32 %v1817, %v1818
    %v1820 = vmax.f32 %v1819, 0.0
    %v1821 = vadd.f32 %v1820, 1e-05
    %v1822 = vrsqrt.pop %v1821
    %v1824 = vrot.slane %v1822, 7
    %v1826 = vmul.f32 %v1371, %v1824
    %v1828 = vrot.slane %v1816, 7
    %v1830 = vmul.f32 %v1826, %v1828
    %v1832 = vrot.slane %v1830, 7
    %v1834 = vsub.f32 %v1371, %v1832
    %v1835 = vlaneseq
    %v1836 = vshrl.u32 %v1835, 7
    %v1837 = vsub.s32 1, %v1836
    %v1838 = vrot.slane %v1826, %v1837
    %v1839 = vmul.f32 %v1582, %v1838
    %v1840 = vmul.f32 %v1587, %v1838
    %v1841 = vmul.f32 %v1592, %v1838
    %v1842 = vmul.f32 %v1597, %v1838
    %v1843 = vmul.f32 %v1602, %v1838
    %v1844 = vmul.f32 %v1607, %v1838
    %v1845 = vmul.f32 %v1612, %v1838
    %v1846 = vmul.f32 %v1617, %v1838
    %v1847 = vmul.f32 %v1622, %v1838
    %v1848 = vmul.f32 %v1627, %v1838
    %v1849 = vmul.f32 %v1632, %v1838
    %v1850 = vmul.f32 %v1637, %v1838
    %v1851 = vmul.f32 %v1642, %v1838
    %v1852 = vmul.f32 %v1647, %v1838
    %v1853 = vmul.f32 %v1652, %v1838
    %v1854 = vmul.f32 %v1657, %v1838
    %v1855 = vlaneseq
    %v1856 = vshrl.u32 %v1855, 7
    %v1857 = vsub.s32 2, %v1856
    %v1858 = vrot.slane %v1834, %v1857
    %v1859 = vadd.f32 %v1839, %v1858
    %v1860 = vadd.f32 %v1840, %v1858
    %v1861 = vadd.f32 %v1841, %v1858
    %v1862 = vadd.f32 %v1842, %v1858
    %v1863 = vadd.f32 %v1843, %v1858
    %v1864 = vadd.f32 %v1844, %v1858
    %v1865 = vadd.f32 %v1845, %v1858
    %v1866 = vadd.f32 %v1846, %v1858
    %v1867 = vadd.f32 %v1847, %v1858
    %v1868 = vadd.f32 %v1848, %v1858
    %v1869 = vadd.f32 %v1849, %v1858
    %v1870 = vadd.f32 %v1850, %v1858
    %v1871 = vadd.f32 %v1851, %v1858
    %v1872 = vadd.f32 %v1852, %v1858
    %v1873 = vadd.f32 %v1853, %v1858
    %v1874 = vadd.f32 %v1854, %v1858
    %v1875 = vmax.f32 %v1859, 0.0
    %v1876 = vmax.f32 %v1860, 0.0
    %v1877 = vmax.f32 %v1861, 0.0
    %v1878 = vmax.f32 %v1862, 0.0
    %v1879 = vmax.f32 %v1863, 0.0
    %v1880 = vmax.f32 %v1864, 0.0
    %v1881 = vmax.f32 %v1865, 0.0
    %v1882 = vmax.f32 %v1866, 0.0
    %v1883 = vmax.f32 %v1867, 0.0
    %v1884 = vmax.f32 %v1868, 0.0
    %v1885 = vmax.f32 %v1869, 0.0
    %v1886 = vmax.f32 %v1870, 0.0
    %v1887 = vmax.f32 %v1871, 0.0
    %v1888 = vmax.f32 %v1872, 0.0
    %v1889 = vmax.f32 %v1873, 0.0
    %v1890 = vmax.f32 %v1874, 0.0
    %v1891 = vlaneseq
    %v1892 = vshrl.u32 %v1891, 7
    %v1893 = vsub.s32 3, %v1892
    %v1894 = vrot.slane %v1371, %v1893
    %1895 = vmatprep.subr.mxu0 0.0
    %1896 = vmatpush1.msra.mxu0 %v1354
    %1897 = vmatprep.subr.mxu0 0.0
    %1898 = vmatpush1.msra.mxu0 %v1355
    %1899 = vmatprep.subr.mxu0 0.0
    %1900 = vmatpush1.msra.mxu0 %v1356
    %1901 = vmatprep.subr.mxu0 0.0
    %1902 = vmatpush1.msra.mxu0 %v1357
    %1903 = vmatprep.subr.mxu0 0.0
    %1904 = vmatpush1.msra.mxu0 %v1358
    %1905 = vmatprep.subr.mxu0 0.0
    %1906 = vmatpush1.msra.mxu0 %v1359
    %1907 = vmatprep.subr.mxu0 0.0
    %1908 = vmatpush1.msra.mxu0 %v1360
    %1909 = vmatprep.subr.mxu0 0.0
    %1910 = vmatpush1.msra.mxu0 %v1361
    %1911 = vmatprep.subr.mxu0 0.0
    %1912 = vmatpush1.msra.mxu0 %v1362
    %1913 = vmatprep.subr.mxu0 0.0
    %1914 = vmatpush1.msra.mxu0 %v1363
    %1915 = vmatprep.subr.mxu0 0.0
    %1916 = vmatpush1.msra.mxu0 %v1364
    %1917 = vmatprep.subr.mxu0 0.0
    %1918 = vmatpush1.msra.mxu0 %v1365
    %1919 = vmatprep.subr.mxu0 0.0
    %1920 = vmatpush1.msra.mxu0 %v1366
    %1921 = vmatprep.subr.mxu0 0.0
    %1922 = vmatpush1.msra.mxu0 %v1367
    %1923 = vmatprep.subr.mxu0 0.0
    %1924 = vmatpush1.msra.mxu0 %v1368
    %1925 = vmatprep.subr.mxu0 0.0
    %1926 = vmatpush1.msra.mxu0 %v1369
    %1927 = vmatprep.subr.mxu0 0.0
    %1928 = vmatpush1.msra.mxu0 0.0
    %1929 = vmatprep.subr.mxu0 0.0
    %1930 = vmatpush1.msra.mxu0 0.0
    %1931 = vmatprep.subr.mxu0 0.0
    %1932 = vmatpush1.msra.mxu0 0.0
    %1933 = vmatprep.subr.mxu0 0.0
    %1934 = vmatpush1.msra.mxu0 0.0
    %1935 = vmatprep.subr.mxu0 0.0
    %1936 = vmatpush1.msra.mxu0 0.0
    %1937 = vmatprep.subr.mxu0 0.0
    %1938 = vmatpush1.msra.mxu0 0.0
    %1939 = vmatprep.subr.mxu0 0.0
    %1940 = vmatpush1.msra.mxu0 0.0
    %1941 = vmatprep.subr.mxu0 0.0
    %1942 = vmatpush1.msra.mxu0 0.0
    %1943 = vmatprep.subr.mxu0 0.0
    %1944 = vmatpush1.msra.mxu0 0.0
    %1945 = vmatprep.subr.mxu0 0.0
    %1946 = vmatpush1.msra.mxu0 0.0
    %1947 = vmatprep.subr.mxu0 0.0
    %1948 = vmatpush1.msra.mxu0 0.0
    %1949 = vmatprep.subr.mxu0 0.0
    %1950 = vmatpush1.msra.mxu0 0.0
    %1951 = vmatprep.subr.mxu0 0.0
    %1952 = vmatpush1.msra.mxu0 0.0
    %1953 = vmatprep.subr.mxu0 0.0
    %1954 = vmatpush1.msra.mxu0 0.0
    %1955 = vmatprep.subr.mxu0 0.0
    %1956 = vmatpush1.msra.mxu0 0.0
    %1957 = vmatprep.subr.mxu0 0.0
    %1958 = vmatpush1.msra.mxu0 0.0
    %1959 = vmatprep.mubr.f32.mxu0 0.0
    %1960 = vmatmul.mubr.f32.gmra.mrb[0].mxu0 %v1875
    %v1961 = vpop.f32.mrb[0].mxu0
    %v1962 = vadd.f32 %v1894, %v1961
    %v1963 = vpop.f32.mrb[0].mxu0
    %1964 = vmatprep.mubr.f32.mxu0 0.0
    %1965 = vmatmul.mubr.f32.gmra.mrb[0].mxu0 %v1876
    %v1966 = vpop.f32.mrb[0].mxu0
    %v1967 = vadd.f32 %v1894, %v1966
    %v1968 = vpop.f32.mrb[0].mxu0
    %1969 = vmatprep.mubr.f32.mxu0 0.0
    %1970 = vmatmul.mubr.f32.gmra.mrb[0].mxu0 %v1877
    %v1971 = vpop.f32.mrb[0].mxu0
    %v1972 = vadd.f32 %v1894, %v1971
    %v1973 = vpop.f32.mrb[0].mxu0
    %1974 = vmatprep.mubr.f32.mxu0 0.0
    %1975 = vmatmul.mubr.f32.gmra.mrb[0].mxu0 %v1878
    %v1976 = vpop.f32.mrb[0].mxu0
    %v1977 = vadd.f32 %v1894, %v1976
    %v1978 = vpop.f32.mrb[0].mxu0
    %1979 = vmatprep.mubr.f32.mxu0 0.0
    %1980 = vmatmul.mubr.f32.gmra.mrb[0].mxu0 %v1879
    %v1981 = vpop.f32.mrb[0].mxu0
    %v1982 = vadd.f32 %v1894, %v1981
    %v1983 = vpop.f32.mrb[0].mxu0
    %1984 = vmatprep.mubr.f32.mxu0 0.0
    %1985 = vmatmul.mubr.f32.gmra.mrb[0].mxu0 %v1880
    %v1986 = vpop.f32.mrb[0].mxu0
    %v1987 = vadd.f32 %v1894, %v1986
    %v1988 = vpop.f32.mrb[0].mxu0
    %1989 = vmatprep.mubr.f32.mxu0 0.0
    %1990 = vmatmul.mubr.f32.gmra.mrb[0].mxu0 %v1881
    %v1991 = vpop.f32.mrb[0].mxu0
    %v1992 = vadd.f32 %v1894, %v1991
    %v1993 = vpop.f32.mrb[0].mxu0
    %1994 = vmatprep.mubr.f32.mxu0 0.0
    %1995 = vmatmul.mubr.f32.gmra.mrb[0].mxu0 %v1882
    %v1996 = vpop.f32.mrb[0].mxu0
    %v1997 = vadd.f32 %v1894, %v1996
    %v1998 = vpop.f32.mrb[0].mxu0
    %1999 = vmatprep.mubr.f32.mxu0 0.0
    %2000 = vmatmul.mubr.f32.gmra.mrb[0].mxu0 %v1883
    %v2001 = vpop.f32.mrb[0].mxu0
    %v2002 = vadd.f32 %v1894, %v2001
    %v2003 = vpop.f32.mrb[0].mxu0
    %2004 = vmatprep.mubr.f32.mxu0 0.0
    %2005 = vmatmul.mubr.f32.gmra.mrb[0].mxu0 %v1884
    %v2006 = vpop.f32.mrb[0].mxu0
    %v2007 = vadd.f32 %v1894, %v2006
    %v2008 = vpop.f32.mrb[0].mxu0
    %2009 = vmatprep.mubr.f32.mxu0 0.0
    %2010 = vmatmul.mubr.f32.gmra.mrb[0].mxu0 %v1885
    %v2011 = vpop.f32.mrb[0].mxu0
    %v2012 = vadd.f32 %v1894, %v2011
    %v2013 = vpop.f32.mrb[0].mxu0
    %2014 = vmatprep.mubr.f32.mxu0 0.0
    %2015 = vmatmul.mubr.f32.gmra.mrb[0].mxu0 %v1886
    %v2016 = vpop.f32.mrb[0].mxu0
    %v2017 = vadd.f32 %v1894, %v2016
    %v2018 = vpop.f32.mrb[0].mxu0
    %2019 = vmatprep.mubr.f32.mxu0 0.0
    %2020 = vmatmul.mubr.f32.gmra.mrb[0].mxu0 %v1887
    %v2021 = vpop.f32.mrb[0].mxu0
    %v2022 = vadd.f32 %v1894, %v2021
    %v2023 = vpop.f32.mrb[0].mxu0
    %2024 = vmatprep.mubr.f32.mxu0 0.0
    %2025 = vmatmul.mubr.f32.gmra.mrb[0].mxu0 %v1888
    %v2026 = vpop.f32.mrb[0].mxu0
    %v2027 = vadd.f32 %v1894, %v2026
    %v2028 = vpop.f32.mrb[0].mxu0
    %2029 = vmatprep.mubr.f32.mxu0 0.0
    %2030 = vmatmul.mubr.f32.gmra.mrb[0].mxu0 %v1889
    %v2031 = vpop.f32.mrb[0].mxu0
    %v2032 = vadd.f32 %v1894, %v2031
    %v2033 = vpop.f32.mrb[0].mxu0
    %2034 = vmatprep.mubr.f32.mxu0 0.0
    %2035 = vmatmul.mubr.f32.gmra.mrb[0].mxu0 %v1890
    %v2036 = vpop.f32.mrb[0].mxu0
    %v2037 = vadd.f32 %v1894, %v2036
    %v2038 = vpop.f32.mrb[0].mxu0
    %2039 = vdwg.mxu0
    %2040 = vmatprep.subr.mxu0 0.0
    %2041 = vmatpush1.msra.mxu0 %v1962
    %2042 = vmatprep.subr.mxu0 0.0
    %2043 = vmatpush1.msra.mxu0 %v1967
    %2044 = vmatprep.subr.mxu0 0.0
    %2045 = vmatpush1.msra.mxu0 %v1972
    %2046 = vmatprep.subr.mxu0 0.0
    %2047 = vmatpush1.msra.mxu0 %v1977
    %2048 = vmatprep.subr.mxu0 0.0
    %2049 = vmatpush1.msra.mxu0 %v1982
    %2050 = vmatprep.subr.mxu0 0.0
    %2051 = vmatpush1.msra.mxu0 %v1987
    %2052 = vmatprep.subr.mxu0 0.0
    %2053 = vmatpush1.msra.mxu0 %v1992
    %2054 = vmatprep.subr.mxu0 0.0
    %2055 = vmatpush1.msra.mxu0 %v1997
    %2056 = vmatprep.subr.mxu0 0.0
    %2057 = vmatpush1.msra.mxu0 %v2002
    %2058 = vmatprep.subr.mxu0 0.0
    %2059 = vmatpush1.msra.mxu0 %v2007
    %2060 = vmatprep.subr.mxu0 0.0
    %2061 = vmatpush1.msra.mxu0 %v2012
    %2062 = vmatprep.subr.mxu0 0.0
    %2063 = vmatpush1.msra.mxu0 %v2017
    %2064 = vmatprep.subr.mxu0 0.0
    %2065 = vmatpush1.msra.mxu0 %v2022
    %2066 = vmatprep.subr.mxu0 0.0
    %2067 = vmatpush1.msra.mxu0 %v2027
    %2068 = vmatprep.subr.mxu0 0.0
    %2069 = vmatpush1.msra.mxu0 %v2032
    %2070 = vmatprep.subr.mxu0 0.0
    %2071 = vmatpush1.msra.mxu0 %v2037
    %2072 = vmatprep.subr.mxu0 0.0
    %2073 = vmatpush1.msra.mxu0 0.0
    %2074 = vmatprep.subr.mxu0 0.0
    %2075 = vmatpush1.msra.mxu0 0.0
    %2076 = vmatprep.subr.mxu0 0.0
    %2077 = vmatpush1.msra.mxu0 0.0
    %2078 = vmatprep.subr.mxu0 0.0
    %2079 = vmatpush1.msra.mxu0 0.0
    %2080 = vmatprep.subr.mxu0 0.0
    %2081 = vmatpush1.msra.mxu0 0.0
    %2082 = vmatprep.subr.mxu0 0.0
    %2083 = vmatpush1.msra.mxu0 0.0
    %2084 = vmatprep.subr.mxu0 0.0
    %2085 = vmatpush1.msra.mxu0 0.0
    %2086 = vmatprep.subr.mxu0 0.0
    %2087 = vmatpush1.msra.mxu0 0.0
    %2088 = vmatprep.subr.mxu0 0.0
    %2089 = vmatpush1.msra.mxu0 0.0
    %2090 = vmatprep.subr.mxu0 0.0
    %2091 = vmatpush1.msra.mxu0 0.0
    %2092 = vmatprep.subr.mxu0 0.0
    %2093 = vmatpush1.msra.mxu0 0.0
    %2094 = vmatprep.subr.mxu0 0.0
    %2095 = vmatpush1.msra.mxu0 0.0
    %2096 = vmatprep.subr.mxu0 0.0
    %2097 = vmatpush1.msra.mxu0 0.0
    %2098 = vmatprep.subr.mxu0 0.0
    %2099 = vmatpush1.msra.mxu0 0.0
    %2100 = vmatprep.subr.mxu0 0.0
    %2101 = vmatpush1.msra.mxu0 0.0
    %2102 = vmatprep.subr.mxu0 0.0
    %2103 = vmatpush1.msra.mxu0 0.0
    %2104 = vmatprep.mubr.f32.mxu0 0.0
    %2105 = vmatmul.mubr.f32.gmra.mrb[0].mxu0 1.0
    %v2106 = vpop.f32.mrb[0].mxu0
    %v2107 = vadd.f32 0.0, %v2106
    %v2108 = vpop.f32.mrb[0].mxu0
    %2109 = vdwg.mxu0
    %v2110 = vmul.f32 %v1962, %v1962
    %v2111 = vmul.f32 %v1967, %v1967
    %v2112 = vmul.f32 %v1972, %v1972
    %v2113 = vmul.f32 %v1977, %v1977
    %v2114 = vmul.f32 %v1982, %v1982
    %v2115 = vmul.f32 %v1987, %v1987
    %v2116 = vmul.f32 %v1992, %v1992
    %v2117 = vmul.f32 %v1997, %v1997
    %v2118 = vmul.f32 %v2002, %v2002
    %v2119 = vmul.f32 %v2007, %v2007
    %v2120 = vmul.f32 %v2012, %v2012
    %v2121 = vmul.f32 %v2017, %v2017
    %v2122 = vmul.f32 %v2022, %v2022
    %v2123 = vmul.f32 %v2027, %v2027
    %v2124 = vmul.f32 %v2032, %v2032
    %v2125 = vmul.f32 %v2037, %v2037
    %2126 = vmatprep.subr.mxu0 0.0
    %2127 = vmatpush1.msra.mxu0 %v2110
    %2128 = vmatprep.subr.mxu0 0.0
    %2129 = vmatpush1.msra.mxu0 %v2111
    %2130 = vmatprep.subr.mxu0 0.0
    %2131 = vmatpush1.msra.mxu0 %v2112
    %2132 = vmatprep.subr.mxu0 0.0
    %2133 = vmatpush1.msra.mxu0 %v2113
    %2134 = vmatprep.subr.mxu0 0.0
    %2135 = vmatpush1.msra.mxu0 %v2114
    %2136 = vmatprep.subr.mxu0 0.0
    %2137 = vmatpush1.msra.mxu0 %v2115
    %2138 = vmatprep.subr.mxu0 0.0
    %2139 = vmatpush1.msra.mxu0 %v2116
    %2140 = vmatprep.subr.mxu0 0.0
    %2141 = vmatpush1.msra.mxu0 %v2117
    %2142 = vmatprep.subr.mxu0 0.0
    %2143 = vmatpush1.msra.mxu0 %v2118
    %2144 = vmatprep.subr.mxu0 0.0
    %2145 = vmatpush1.msra.mxu0 %v2119
    %2146 = vmatprep.subr.mxu0 0.0
    %2147 = vmatpush1.msra.mxu0 %v2120
    %2148 = vmatprep.subr.mxu0 0.0
    %2149 = vmatpush1.msra.mxu0 %v2121
    %2150 = vmatprep.subr.mxu0 0.0
    %2151 = vmatpush1.msra.mxu0 %v2122
    %2152 = vmatprep.subr.mxu0 0.0
    %2153 = vmatpush1.msra.mxu0 %v2123
    %2154 = vmatprep.subr.mxu0 0.0
    %2155 = vmatpush1.msra.mxu0 %v2124
    %2156 = vmatprep.subr.mxu0 0.0
    %2157 = vmatpush1.msra.mxu0 %v2125
    %2158 = vmatprep.subr.mxu0 0.0
    %2159 = vmatpush1.msra.mxu0 0.0
    %2160 = vmatprep.subr.mxu0 0.0
    %2161 = vmatpush1.msra.mxu0 0.0
    %2162 = vmatprep.subr.mxu0 0.0
    %2163 = vmatpush1.msra.mxu0 0.0
    %2164 = vmatprep.subr.mxu0 0.0
    %2165 = vmatpush1.msra.mxu0 0.0
    %2166 = vmatprep.subr.mxu0 0.0
    %2167 = vmatpush1.msra.mxu0 0.0
    %2168 = vmatprep.subr.mxu0 0.0
    %2169 = vmatpush1.msra.mxu0 0.0
    %2170 = vmatprep.subr.mxu0 0.0
    %2171 = vmatpush1.msra.mxu0 0.0
    %2172 = vmatprep.subr.mxu0 0.0
    %2173 = vmatpush1.msra.mxu0 0.0
    %2174 = vmatprep.subr.mxu0 0.0
    %2175 = vmatpush1.msra.mxu0 0.0
    %2176 = vmatprep.subr.mxu0 0.0
    %2177 = vmatpush1.msra.mxu0 0.0
    %2178 = vmatprep.subr.mxu0 0.0
    %2179 = vmatpush1.msra.mxu0 0.0
    %2180 = vmatprep.subr.mxu0 0.0
    %2181 = vmatpush1.msra.mxu0 0.0
    %2182 = vmatprep.subr.mxu0 0.0
    %2183 = vmatpush1.msra.mxu0 0.0
    %2184 = vmatprep.subr.mxu0 0.0
    %2185 = vmatpush1.msra.mxu0 0.0
    %2186 = vmatprep.subr.mxu0 0.0
    %2187 = vmatpush1.msra.mxu0 0.0
    %2188 = vmatprep.subr.mxu0 0.0
    %2189 = vmatpush1.msra.mxu0 0.0
    %2190 = vmatprep.mubr.f32.mxu0 0.0
    %2191 = vmatmul.mubr.f32.gmra.mrb[0].mxu0 1.0
    %v2192 = vpop.f32.mrb[0].mxu0
    %v2193 = vadd.f32 0.0, %v2192
    %v2194 = vpop.f32.mrb[0].mxu0
    %2195 = vdwg.mxu0
    %v2196 = vmul.f32 %v2107, 0.0078125
    %v2197 = vmul.f32 %v2193, 0.0078125
    %v2198 = vmul.f32 %v2196, %v2196
    %v2199 = vsub.f32 %v2197, %v2198
    %v2200 = vmax.f32 %v2199, 0.0
    %v2201 = vadd.f32 %v2200, 1e-05
    %v2202 = vrsqrt.pop %v2201
    %v2204 = vrot.slane %v2202, 4
    %v2206 = vmul.f32 %v1371, %v2204
    %v2208 = vrot.slane %v2196, 4
    %v2210 = vmul.f32 %v2206, %v2208
    %v2212 = vrot.slane %v2210, 7
    %v2214 = vsub.f32 %v1371, %v2212
    %v2215 = vlaneseq
    %v2216 = vshrl.u32 %v2215, 7
    %v2217 = vsub.s32 4, %v2216
    %v2218 = vrot.slane %v2206, %v2217
    %v2219 = vmul.f32 %v1962, %v2218
    %v2220 = vmul.f32 %v1967, %v2218
    %v2221 = vmul.f32 %v1972, %v2218
    %v2222 = vmul.f32 %v1977, %v2218
    %v2223 = vmul.f32 %v1982, %v2218
    %v2224 = vmul.f32 %v1987, %v2218
    %v2225 = vmul.f32 %v1992, %v2218
    %v2226 = vmul.f32 %v1997, %v2218
    %v2227 = vmul.f32 %v2002, %v2218
    %v2228 = vmul.f32 %v2007, %v2218
    %v2229 = vmul.f32 %v2012, %v2218
    %v2230 = vmul.f32 %v2017, %v2218
    %v2231 = vmul.f32 %v2022, %v2218
    %v2232 = vmul.f32 %v2027, %v2218
    %v2233 = vmul.f32 %v2032, %v2218
    %v2234 = vmul.f32 %v2037, %v2218
    %v2235 = vlaneseq
    %v2236 = vshrl.u32 %v2235, 7
    %v2237 = vsub.s32 5, %v2236
    %v2238 = vrot.slane %v2214, %v2237
    %v2239 = vadd.f32 %v2219, %v2238
    %v2240 = vadd.f32 %v2220, %v2238
    %v2241 = vadd.f32 %v2221, %v2238
    %v2242 = vadd.f32 %v2222, %v2238
    %v2243 = vadd.f32 %v2223, %v2238
    %v2244 = vadd.f32 %v2224, %v2238
    %v2245 = vadd.f32 %v2225, %v2238
    %v2246 = vadd.f32 %v2226, %v2238
    %v2247 = vadd.f32 %v2227, %v2238
    %v2248 = vadd.f32 %v2228, %v2238
    %v2249 = vadd.f32 %v2229, %v2238
    %v2250 = vadd.f32 %v2230, %v2238
    %v2251 = vadd.f32 %v2231, %v2238
    %v2252 = vadd.f32 %v2232, %v2238
    %v2253 = vadd.f32 %v2233, %v2238
    %v2254 = vadd.f32 %v2234, %v2238
    %v2255 = vmax.f32 %v2239, 0.0
    %v2256 = vmax.f32 %v2240, 0.0
    %v2257 = vmax.f32 %v2241, 0.0
    %v2258 = vmax.f32 %v2242, 0.0
    %v2259 = vmax.f32 %v2243, 0.0
    %v2260 = vmax.f32 %v2244, 0.0
    %v2261 = vmax.f32 %v2245, 0.0
    %v2262 = vmax.f32 %v2246, 0.0
    %v2263 = vmax.f32 %v2247, 0.0
    %v2264 = vmax.f32 %v2248, 0.0
    %v2265 = vmax.f32 %v2249, 0.0
    %v2266 = vmax.f32 %v2250, 0.0
    %v2267 = vmax.f32 %v2251, 0.0
    %v2268 = vmax.f32 %v2252, 0.0
    %v2269 = vmax.f32 %v2253, 0.0
    %v2270 = vmax.f32 %v2254, 0.0
    %2271 = vmatprep.subr.mxu0 0.0
    %2272 = vmatpush1.msra.mxu0 %v2255
    %2273 = vmatprep.subr.mxu0 0.0
    %2274 = vmatpush1.msra.mxu0 %v2256
    %2275 = vmatprep.subr.mxu0 0.0
    %2276 = vmatpush1.msra.mxu0 %v2257
    %2277 = vmatprep.subr.mxu0 0.0
    %2278 = vmatpush1.msra.mxu0 %v2258
    %2279 = vmatprep.subr.mxu0 0.0
    %2280 = vmatpush1.msra.mxu0 %v2259
    %2281 = vmatprep.subr.mxu0 0.0
    %2282 = vmatpush1.msra.mxu0 %v2260
    %2283 = vmatprep.subr.mxu0 0.0
    %2284 = vmatpush1.msra.mxu0 %v2261
    %2285 = vmatprep.subr.mxu0 0.0
    %2286 = vmatpush1.msra.mxu0 %v2262
    %2287 = vmatprep.subr.mxu0 0.0
    %2288 = vmatpush1.msra.mxu0 %v2263
    %2289 = vmatprep.subr.mxu0 0.0
    %2290 = vmatpush1.msra.mxu0 %v2264
    %2291 = vmatprep.subr.mxu0 0.0
    %2292 = vmatpush1.msra.mxu0 %v2265
    %2293 = vmatprep.subr.mxu0 0.0
    %2294 = vmatpush1.msra.mxu0 %v2266
    %2295 = vmatprep.subr.mxu0 0.0
    %2296 = vmatpush1.msra.mxu0 %v2267
    %2297 = vmatprep.subr.mxu0 0.0
    %2298 = vmatpush1.msra.mxu0 %v2268
    %2299 = vmatprep.subr.mxu0 0.0
    %2300 = vmatpush1.msra.mxu0 %v2269
    %2301 = vmatprep.subr.mxu0 0.0
    %2302 = vmatpush1.msra.mxu0 %v2270
    %2303 = vmatprep.subr.mxu0 0.0
    %2304 = vmatpush1.msra.mxu0 0.0
    %2305 = vmatprep.subr.mxu0 0.0
    %2306 = vmatpush1.msra.mxu0 0.0
    %2307 = vmatprep.subr.mxu0 0.0
    %2308 = vmatpush1.msra.mxu0 0.0
    %2309 = vmatprep.subr.mxu0 0.0
    %2310 = vmatpush1.msra.mxu0 0.0
    %2311 = vmatprep.subr.mxu0 0.0
    %2312 = vmatpush1.msra.mxu0 0.0
    %2313 = vmatprep.subr.mxu0 0.0
    %2314 = vmatpush1.msra.mxu0 0.0
    %2315 = vmatprep.subr.mxu0 0.0
    %2316 = vmatpush1.msra.mxu0 0.0
    %2317 = vmatprep.subr.mxu0 0.0
    %2318 = vmatpush1.msra.mxu0 0.0
    %2319 = vmatprep.subr.mxu0 0.0
    %2320 = vmatpush1.msra.mxu0 0.0
    %2321 = vmatprep.subr.mxu0 0.0
    %2322 = vmatpush1.msra.mxu0 0.0
    %2323 = vmatprep.subr.mxu0 0.0
    %2324 = vmatpush1.msra.mxu0 0.0
    %2325 = vmatprep.subr.mxu0 0.0
    %2326 = vmatpush1.msra.mxu0 0.0
    %2327 = vmatprep.subr.mxu0 0.0
    %2328 = vmatpush1.msra.mxu0 0.0
    %2329 = vmatprep.subr.mxu0 0.0
    %2330 = vmatpush1.msra.mxu0 0.0
    %2331 = vmatprep.subr.mxu0 0.0
    %2332 = vmatpush1.msra.mxu0 0.0
    %2333 = vmatprep.subr.mxu0 0.0
    %2334 = vmatpush1.msra.mxu0 0.0
    %2335 = vmatprep.mubr.f32.mxu0 0.0
    %2336 = vmatmul.mubr.f32.gmra.mrb[0].mxu0 1.0
    %v2337 = vpop.f32.mrb[0].mxu0
    %v2338 = vadd.f32 0.0, %v2337
    %v2339 = vpop.f32.mrb[0].mxu0
    %2340 = vdwg.mxu0
    %v2341 = vmul.f32 %v2255, %v2255
    %v2342 = vmul.f32 %v2256, %v2256
    %v2343 = vmul.f32 %v2257, %v2257
    %v2344 = vmul.f32 %v2258, %v2258
    %v2345 = vmul.f32 %v2259, %v2259
    %v2346 = vmul.f32 %v2260, %v2260
    %v2347 = vmul.f32 %v2261, %v2261
    %v2348 = vmul.f32 %v2262, %v2262
    %v2349 = vmul.f32 %v2263, %v2263
    %v2350 = vmul.f32 %v2264, %v2264
    %v2351 = vmul.f32 %v2265, %v2265
    %v2352 = vmul.f32 %v2266, %v2266
    %v2353 = vmul.f32 %v2267, %v2267
    %v2354 = vmul.f32 %v2268, %v2268
    %v2355 = vmul.f32 %v2269, %v2269
    %v2356 = vmul.f32 %v2270, %v2270
    %2357 = vmatprep.subr.mxu0 0.0
    %2358 = vmatpush1.msra.mxu0 %v2341
    %2359 = vmatprep.subr.mxu0 0.0
    %2360 = vmatpush1.msra.mxu0 %v2342
    %2361 = vmatprep.subr.mxu0 0.0
    %2362 = vmatpush1.msra.mxu0 %v2343
    %2363 = vmatprep.subr.mxu0 0.0
    %2364 = vmatpush1.msra.mxu0 %v2344
    %2365 = vmatprep.subr.mxu0 0.0
    %2366 = vmatpush1.msra.mxu0 %v2345
    %2367 = vmatprep.subr.mxu0 0.0
    %2368 = vmatpush1.msra.mxu0 %v2346
    %2369 = vmatprep.subr.mxu0 0.0
    %2370 = vmatpush1.msra.mxu0 %v2347
    %2371 = vmatprep.subr.mxu0 0.0
    %2372 = vmatpush1.msra.mxu0 %v2348
    %2373 = vmatprep.subr.mxu0 0.0
    %2374 = vmatpush1.msra.mxu0 %v2349
    %2375 = vmatprep.subr.mxu0 0.0
    %2376 = vmatpush1.msra.mxu0 %v2350
    %2377 = vmatprep.subr.mxu0 0.0
    %2378 = vmatpush1.msra.mxu0 %v2351
    %2379 = vmatprep.subr.mxu0 0.0
    %2380 = vmatpush1.msra.mxu0 %v2352
    %2381 = vmatprep.subr.mxu0 0.0
    %2382 = vmatpush1.msra.mxu0 %v2353
    %2383 = vmatprep.subr.mxu0 0.0
    %2384 = vmatpush1.msra.mxu0 %v2354
    %2385 = vmatprep.subr.mxu0 0.0
    %2386 = vmatpush1.msra.mxu0 %v2355
    %2387 = vmatprep.subr.mxu0 0.0
    %2388 = vmatpush1.msra.mxu0 %v2356
    %2389 = vmatprep.subr.mxu0 0.0
    %2390 = vmatpush1.msra.mxu0 0.0
    %2391 = vmatprep.subr.mxu0 0.0
    %2392 = vmatpush1.msra.mxu0 0.0
    %2393 = vmatprep.subr.mxu0 0.0
    %2394 = vmatpush1.msra.mxu0 0.0
    %2395 = vmatprep.subr.mxu0 0.0
    %2396 = vmatpush1.msra.mxu0 0.0
    %2397 = vmatprep.subr.mxu0 0.0
    %2398 = vmatpush1.msra.mxu0 0.0
    %2399 = vmatprep.subr.mxu0 0.0
    %2400 = vmatpush1.msra.mxu0 0.0
    %2401 = vmatprep.subr.mxu0 0.0
    %2402 = vmatpush1.msra.mxu0 0.0
    %2403 = vmatprep.subr.mxu0 0.0
    %2404 = vmatpush1.msra.mxu0 0.0
    %2405 = vmatprep.subr.mxu0 0.0
    %2406 = vmatpush1.msra.mxu0 0.0
    %2407 = vmatprep.subr.mxu0 0.0
    %2408 = vmatpush1.msra.mxu0 0.0
    %2409 = vmatprep.subr.mxu0 0.0
    %2410 = vmatpush1.msra.mxu0 0.0
    %2411 = vmatprep.subr.mxu0 0.0
    %2412 = vmatpush1.msra.mxu0 0.0
    %2413 = vmatprep.subr.mxu0 0.0
    %2414 = vmatpush1.msra.mxu0 0.0
    %2415 = vmatprep.subr.mxu0 0.0
    %2416 = vmatpush1.msra.mxu0 0.0
    %2417 = vmatprep.subr.mxu0 0.0
    %2418 = vmatpush1.msra.mxu0 0.0
    %2419 = vmatprep.subr.mxu0 0.0
    %2420 = vmatpush1.msra.mxu0 0.0
    %2421 = vmatprep.mubr.f32.mxu0 0.0
    %2422 = vmatmul.mubr.f32.gmra.mrb[0].mxu0 1.0
    %v2423 = vpop.f32.mrb[0].mxu0
    %v2424 = vadd.f32 0.0, %v2423
    %v2425 = vpop.f32.mrb[0].mxu0
    %2426 = vdwg.mxu0
    %v2427 = vmul.f32 %v2338, 0.0078125
    %v2428 = vmul.f32 %v2424, 0.0078125
    %v2429 = vmul.f32 %v2427, %v2427
    %v2430 = vsub.f32 %v2428, %v2429
    %v2431 = vmax.f32 %v2430, 0.0
    %v2432 = vadd.f32 %v2431, 1e-05
    %v2433 = vrsqrt.pop %v2432
    %v2435 = vrot.slane %v2433, 2
    %v2437 = vmul.f32 %v1371, %v2435
    %v2439 = vrot.slane %v2427, 2
    %v2441 = vmul.f32 %v2437, %v2439
    %v2443 = vrot.slane %v2441, 7
    %v2445 = vsub.f32 %v1371, %v2443
    %v2446 = vlaneseq
    %v2447 = vshrl.u32 %v2446, 7
    %v2448 = vsub.s32 6, %v2447
    %v2449 = vrot.slane %v2437, %v2448
    %v2450 = vmul.f32 %v2255, %v2449
    %v2451 = vmul.f32 %v2256, %v2449
    %v2452 = vmul.f32 %v2257, %v2449
    %v2453 = vmul.f32 %v2258, %v2449
    %v2454 = vmul.f32 %v2259, %v2449
    %v2455 = vmul.f32 %v2260, %v2449
    %v2456 = vmul.f32 %v2261, %v2449
    %v2457 = vmul.f32 %v2262, %v2449
    %v2458 = vmul.f32 %v2263, %v2449
    %v2459 = vmul.f32 %v2264, %v2449
    %v2460 = vmul.f32 %v2265, %v2449
    %v2461 = vmul.f32 %v2266, %v2449
    %v2462 = vmul.f32 %v2267, %v2449
    %v2463 = vmul.f32 %v2268, %v2449
    %v2464 = vmul.f32 %v2269, %v2449
    %v2465 = vmul.f32 %v2270, %v2449
    %v2466 = vlaneseq
    %v2467 = vshrl.u32 %v2466, 7
    %v2468 = vsub.s32 7, %v2467
    %v2469 = vrot.slane %v2445, %v2468
    %v2470 = vadd.f32 %v2450, %v2469
    %v2471 = vadd.f32 %v2451, %v2469
    %v2472 = vadd.f32 %v2452, %v2469
    %v2473 = vadd.f32 %v2453, %v2469
    %v2474 = vadd.f32 %v2454, %v2469
    %v2475 = vadd.f32 %v2455, %v2469
    %v2476 = vadd.f32 %v2456, %v2469
    %v2477 = vadd.f32 %v2457, %v2469
    %v2478 = vadd.f32 %v2458, %v2469
    %v2479 = vadd.f32 %v2459, %v2469
    %v2480 = vadd.f32 %v2460, %v2469
    %v2481 = vadd.f32 %v2461, %v2469
    %v2482 = vadd.f32 %v2462, %v2469
    %v2483 = vadd.f32 %v2463, %v2469
    %v2484 = vadd.f32 %v2464, %v2469
    %v2485 = vadd.f32 %v2465, %v2469
    %v2486 = vmax.f32 %v2470, 0.0
    %v2487 = vmax.f32 %v2471, 0.0
    %v2488 = vmax.f32 %v2472, 0.0
    %v2489 = vmax.f32 %v2473, 0.0
    %v2490 = vmax.f32 %v2474, 0.0
    %v2491 = vmax.f32 %v2475, 0.0
    %v2492 = vmax.f32 %v2476, 0.0
    %v2493 = vmax.f32 %v2477, 0.0
    %v2494 = vmax.f32 %v2478, 0.0
    %v2495 = vmax.f32 %v2479, 0.0
    %v2496 = vmax.f32 %v2480, 0.0
    %v2497 = vmax.f32 %v2481, 0.0
    %v2498 = vmax.f32 %v2482, 0.0
    %v2499 = vmax.f32 %v2483, 0.0
    %v2500 = vmax.f32 %v2484, 0.0
    %v2501 = vmax.f32 %v2485, 0.0
    %2502 = vst [vmem:[#allocation12] sm:$0xff] %v2486
    %2503 = vst [vmem:[#allocation12 + $0x8] sm:$0xff] %v2487
    %2504 = vst [vmem:[#allocation12 + $0x10] sm:$0xff] %v2488
    %2505 = vst [vmem:[#allocation12 + $0x18] sm:$0xff] %v2489
    %2506 = vst [vmem:[#allocation12 + $0x20] sm:$0xff] %v2490
    %2507 = vst [vmem:[#allocation12 + $0x28] sm:$0xff] %v2491
    %2508 = vst [vmem:[#allocation12 + $0x30] sm:$0xff] %v2492
    %2509 = vst [vmem:[#allocation12 + $0x38] sm:$0xff] %v2493
    %2510 = vst [vmem:[#allocation12 + $0x40] sm:$0xff] %v2494
    %2511 = vst [vmem:[#allocation12 + $0x48] sm:$0xff] %v2495
    %2512 = vst [vmem:[#allocation12 + $0x50] sm:$0xff] %v2496
    %2513 = vst [vmem:[#allocation12 + $0x58] sm:$0xff] %v2497
    %2514 = vst [vmem:[#allocation12 + $0x60] sm:$0xff] %v2498
    %2515 = vst [vmem:[#allocation12 + $0x68] sm:$0xff] %v2499
    %2516 = vst [vmem:[#allocation12 + $0x70] sm:$0xff] %v2500
    %2517 = vst [vmem:[#allocation12 + $0x78] sm:$0xff] %v2501
    // Predicated region
    $region46: #{tpu_custom_call.1} parent=1 // pred_check
      _
    $region47: #{tpu_custom_call.1} parent=1 // pred_check_branch
      %2519 = sbr.rel (0) target = $region49
    $region48: #{tpu_custom_call.1} parent=1 // pred_region
      %s2521 = ssub.s32 2048, 2048
      %2522 = vsyncadd [#allocation4], %s2521
      %s2523 = sshll.u32 [#allocation12], 4
      %s2524 = int_to_ptr.vmem [resolvable:$true] %s2523
      %2529 = dma.vmem_to_hbm [thread:$0]  %s2524, 2048, %s6, [#allocation4], 128, 128, 8
    $region49: #{tpu_custom_call.1} parent=1 // pred_fallthru
      _
    // Predicated region
    $region50: #{tpu_custom_call.1} parent=1 // pred_check
      _
    $region51: #{tpu_custom_call.1} parent=1 // pred_check_branch
      %2531 = sbr.rel (0) target = $region53
    $region52: #{tpu_custom_call.1} parent=1 // pred_region
      %2532 = dma.done [#allocation4], 2048
    $region53: #{tpu_custom_call.1} parent=1 // pred_fallthru
      _
    %2533 = vsyncpa [#allocation3], 1
    %2534 = vsyncpa [#allocation8], 1
    %2535 = vsyncpa [#allocation11], 1
    %2536 = vsyncpa [#allocation4], 1
    %2537 = vsyncpa [#allocation5], 1

</llo_original>
